<compile_context>
chip_gen: v7x
topology: tpu7x:2x2x1
jax: 0.10.0
libtpu: 0.0.40
codegen_flags: <defaults>
</compile_context>

<pallas_src>
import math
import functools

import numpy as np
import jax
import jax.numpy as jnp
from jax import lax
from jax.experimental import pallas as pl
from jax.experimental.pallas import tpu as pltpu


def _witran_kernel(gx_ref, wr_ref, wc_ref, out_ref, hrow_ref, hcol_ref, *,
                   T, Bn, H, use_xlu_roll):
    """One grid step == T fused anti-diagonal `slice` steps of the 2D PSGMU."""
    # Re-init hidden state at the start of each serial sweep (per batch chunk).
    @pl.when(pl.program_id(1) == 0)
    def _init():
        hrow_ref[...] = jnp.zeros_like(hrow_ref)
        hcol_ref[...] = jnp.zeros_like(hcol_ref)

    # Weights stay resident in VMEM; load once per grid step.
    w_row = wr_ref[...]                     # (H, 6H)
    w_col = wc_ref[...]                     # (H, 6H)

    def step(t, carry):
        hrow = hrow_ref[...]                # (R*Bc, H)
        hcol = hcol_ref[...]                # (R*Bc, H)

        # gates_x already contains the input projection + masked bias.
        gate = (gx_ref[t][0]
                + jnp.dot(hrow, w_row, preferred_element_type=jnp.float32)
                + jnp.dot(hcol, w_col, preferred_element_type=jnp.float32))

        sig = jax.nn.sigmoid(gate[:, : 4 * H])
        tnh = jnp.tanh(gate[:, 4 * H:])
        u_r = sig[:, 0 * H:1 * H]
        o_r = sig[:, 1 * H:2 * H]
        u_c = sig[:, 2 * H:3 * H]
        o_c = sig[:, 3 * H:4 * H]
        i_r = tnh[:, :H]
        i_c = tnh[:, H:]

        new_row = jnp.tanh((1.0 - u_r) * hrow + u_r * i_r) * o_r
        new_col = jnp.tanh((1.0 - u_c) * hcol + u_c * i_c) * o_c

        out_ref[t] = jnp.concatenate([new_row, new_col], axis=-1)[None]

        hrow_ref[...] = new_row
        # torch.roll(hidden_slice_col, shifts=batch, dims=0) restricted to the chunk.
        if use_xlu_roll:
            hcol_ref[...] = pltpu.roll(new_col, shift=Bn, axis=0)
        else:
            hcol_ref[...] = jnp.concatenate([new_col[-Bn:], new_col[:-Bn]], axis=0)
        return carry

    lax.fori_loop(0, T, step, 0, unroll=True)


def witran_2dpsgmu_encoder(x, W_first_layer, B_param, hidden_size, num_layers=1):
    """Matches WITRAN_2DPSGMU_Encoder.forward with flag == 1.

    x: (batch, d1, d2, input_size) float32.
    Returns (output_all_slice, hidden_col_all, hidden_row_all).
    """
    # TODO(synk): the reference __init__ never defines self.W_other_layer, so the
    # num_layers > 1 branch of the reference forward cannot run; only layer 0 is
    # implemented (dropout / res_mode are no-ops in that case).
    assert num_layers == 1
    batch, d1, d2, input_size = x.shape
    H = hidden_size

    xp = jnp.transpose(x, (2, 0, 1, 3))            # flag == 1: permute(2, 0, 1, 3)
    R, _, C, _ = xp.shape                          # Water2sea_slice_num, Original_slice_len
    L = R + C - 1                                  # Water2sea_slice_len

    W = W_first_layer                              # (6H, 2H + I)
    w_row = jnp.transpose(W[:, :H])                # (H, 6H)
    w_col = jnp.transpose(W[:, H:2 * H])           # (H, 6H)
    w_x = jnp.transpose(W[:, 2 * H:])              # (I, 6H)
    bias = B_param[0]                              # (6H,)

    # (1) hoisted input projection for ALL steps at once (parallel MXU matmul).
    gx = jnp.einsum('rbci,ig->rcbg', xp, w_x)      # (R, C, B, 6H)

    # (2) water2sea diagonal shift via pad + reshape (replaces R dynamic-update-slices):
    #     shifted[r, r:r+C] = gx[r, :], zeros elsewhere.
    gx = jnp.pad(gx, ((0, 0), (0, R), (0, 0), (0, 0)))         # (R, C+R, B, 6H)
    gx = gx.reshape(R * (C + R), batch, 6 * H)[: R * L]
    gx = gx.reshape(R, L, batch, 6 * H)
    gx = jnp.transpose(gx, (1, 0, 2, 3))                       # (L, R, B, 6H)

    # (3) bias folded into the precomputed gates with the reference's masking:
    #     added only while slice < R and only to rows with r <= slice.
    s_ids = jnp.arange(L)[:, None]
    r_ids = jnp.arange(R)[None, :]
    bias_mask = (s_ids < R) & (r_ids <= s_ids)                 # (L, R)
    gx = gx + jnp.where(bias_mask[:, :, None, None], bias, 0.0)

    # (4) split batch into P chunks for the "parallel" grid axis (v7x megacore).
    #     Rows inside a chunk keep (r, b_local) order so the col-roll stays local.
    P = 2 if batch % 2 == 0 else 1
    Bc = batch // P
    gx = gx.reshape(L, R, P, Bc, 6 * H)
    gx = jnp.transpose(gx, (0, 2, 1, 3, 4)).reshape(L, P, R * Bc, 6 * H)

    # (5) fuse T recurrence steps per grid iteration (pad L up to a multiple of T;
    #     padded steps see zero gates and their outputs are discarded).
    T = min(L, 8)
    Lp = pl.cdiv(L, T) * T
    if Lp != L:
        gx = jnp.pad(gx, ((0, Lp - L), (0, 0), (0, 0), (0, 0)))
    gx = gx.reshape(Lp, P, R * Bc, 6 * H)

    kernel = functools.partial(_witran_kernel, T=T, Bn=Bc, H=H,
                               use_xlu_roll=((R * Bc) % 8 == 0))
    out_k = pl.pallas_call(
        kernel,
        out_shape=jax.ShapeDtypeStruct((Lp, P, R * Bc, 2 * H), jnp.float32),
        grid=(P, Lp // T),
        in_specs=[
            pl.BlockSpec((T, 1, R * Bc, 6 * H), lambda p, sb: (sb, p, 0, 0)),
            pl.BlockSpec((H, 6 * H), lambda p, sb: (0, 0)),
            pl.BlockSpec((H, 6 * H), lambda p, sb: (0, 0)),
        ],
        out_specs=pl.BlockSpec((T, 1, R * Bc, 2 * H), lambda p, sb: (sb, p, 0, 0)),
        scratch_shapes=[
            pltpu.VMEM((R * Bc, H), jnp.float32),   # hidden_slice_row (carried)
            pltpu.VMEM((R * Bc, H), jnp.float32),   # hidden_slice_col (carried)
        ],
        compiler_params=pltpu.CompilerParams(
            dimension_semantics=("parallel", "arbitrary")),
    )(gx, w_row, w_col)

    # Reorder chunk-major rows (p, r, b_local) back to PyTorch's (r, b) row order.
    out_t = out_k[:L].reshape(L, P, R, Bc, 2 * H)
    out_t = jnp.transpose(out_t, (0, 2, 1, 3, 4)).reshape(L, R * batch, 2 * H)
    output_all_slice = jnp.transpose(out_t, (1, 0, 2))          # (R*B, L, 2H)

    # hidden_row_all entry r == hidden_slice_row[r*B:(r+1)*B] right after slice s = C-1+r
    hr = out_t[C - 1 + jnp.arange(R)]                           # (R, R*B, 2H)
    hr = hr.reshape(R, R, batch, 2 * H)[jnp.arange(R), jnp.arange(R), :, :H]   # (R, B, H)
    hidden_row_all = jnp.transpose(hr, (1, 0, 2)).reshape(batch, num_layers, R, H)

    # hidden_col_all entry c == hidden_slice_col[(R-1)*B:] after slice s = R-1+c (pre-roll)
    hc = out_t[R - 1 + jnp.arange(C), (R - 1) * batch: R * batch, H:]          # (C, B, H)
    hidden_col_all = jnp.transpose(hc, (1, 0, 2)).reshape(batch, num_layers, C, H)

    # flag == 1 return order
    return output_all_slice, hidden_col_all, hidden_row_all


def reference_forward(x, W, Bp, H, num_layers=1):
    """Pure-JAX line-by-line port of the PyTorch forward (num_layers == 1)."""
    batch, d1, d2, I = x.shape
    xp = jnp.transpose(x, (2, 0, 1, 3))
    R, _, C, _ = xp.shape
    L = R + C - 1
    inp_tr = jnp.zeros((R, batch, L, I), x.dtype)
    for r in range(R):
        inp_tr = inp_tr.at[r, :, r:r + C, :].set(xp[r])
    a = inp_tr.reshape(R * batch, L, I)
    hrow = jnp.zeros((R * batch, H), jnp.float32)
    hcol = jnp.zeros((R * batch, H), jnp.float32)
    bias = Bp[0]
    outs, rows, cols = [], [], []
    for s in range(L):
        xcat = jnp.concatenate([hrow, hcol, a[:, s, :]], axis=-1)
        gate = jnp.dot(xcat, W.T, precision=lax.Precision.HIGHEST)
        if s < R:
            gate = gate.at[: batch * (s + 1)].add(bias)
        sig = jax.nn.sigmoid(gate[:, : 4 * H])
        tnh = jnp.tanh(gate[:, 4 * H:])
        u_r, o_r, u_c, o_c = jnp.split(sig, 4, axis=-1)
        i_r, i_c = jnp.split(tnh, 2, axis=-1)
        hrow = jnp.tanh((1 - u_r) * hrow + u_r * i_r) * o_r
        hcol = jnp.tanh((1 - u_c) * hcol + u_c * i_c) * o_c
        outs.append(jnp.concatenate([hrow, hcol], axis=-1))
        if s >= C - 1:
            r0 = s - C + 1
            rows.append(hrow[r0 * batch:(r0 + 1) * batch])
        if s >= R - 1:
            cols.append(hcol[(R - 1) * batch:])
        hcol = jnp.roll(hcol, batch, axis=0)
    output_all = jnp.stack(outs, axis=1)
    hidden_row_all = jnp.stack(rows, axis=1).reshape(batch, num_layers, R, H)
    hidden_col_all = jnp.stack(cols, axis=1).reshape(batch, num_layers, C, H)
    return output_all, hidden_col_all, hidden_row_all


if __name__ == "__main__":
    key = jax.random.PRNGKey(0)
    batch, water_rows, water_cols = 2, 4, 6       # R = water_cols = 6, C = water_rows = 4
    input_size, hidden_size, num_layers = 8, 32, 1

    stdv = 1.0 / math.sqrt(hidden_size)
    k1, k2, k3 = jax.random.split(key, 3)
    W_first = jax.random.uniform(
        k1, (6 * hidden_size, input_size + 2 * hidden_size), jnp.float32, -stdv, stdv)
    B_param = jax.random.uniform(
        k2, (num_layers, 6 * hidden_size), jnp.float32, -stdv, stdv)
    x = jax.random.normal(k3, (batch, water_rows, water_cols, input_size), jnp.float32)

    out, hcol, hrow = witran_2dpsgmu_encoder(x, W_first, B_param, hidden_size, num_layers)
    out, hcol, hrow = jax.block_until_ready((out, hcol, hrow))

    # sanity-check against a pure-JAX (HIGHEST-precision) port of the PyTorch forward.
    # Tolerance 2e-2: the optimized kernel runs the matmuls at default (bf16 MXU)
    # precision, as recommended.
    ro, rc, rr = reference_forward(x, W_first, B_param, hidden_size, num_layers)
    L = water_rows + water_cols - 1
    assert out.shape == (water_cols * batch, L, 2 * hidden_size)
    assert hcol.shape == (batch, num_layers, water_rows, hidden_size)
    assert hrow.shape == (batch, num_layers, water_cols, hidden_size)
    np.testing.assert_allclose(np.asarray(out), np.asarray(ro), rtol=2e-2, atol=2e-2)
    np.testing.assert_allclose(np.asarray(hcol), np.asarray(rc), rtol=2e-2, atol=2e-2)
    np.testing.assert_allclose(np.asarray(hrow), np.asarray(rr), rtol=2e-2, atol=2e-2)

    print("KERNEL_OK")
</pallas_src>

<mosaic_0001>
module attributes {stable_mosaic.version = 11 : i64} {
  func.func @_witran_kernel(%arg0: i32, %arg1: i32, %arg2: memref<8x1x6x192xf32, #tpu.memory_space<vmem>>, %arg3: memref<32x192xf32, #tpu.memory_space<vmem>>, %arg4: memref<32x192xf32, #tpu.memory_space<vmem>>, %arg5: memref<8x1x6x64xf32, #tpu.memory_space<vmem>>, %arg6: memref<6x32xf32, #tpu.memory_space<vmem>>, %arg7: memref<6x32xf32, #tpu.memory_space<vmem>>) attributes {dimension_semantics = [#tpu.dimension_semantics<parallel>, #tpu.dimension_semantics<arbitrary>], iteration_bounds = array<i64: 2, 2>, scalar_prefetch = 0 : i64, scratch_operands = 2 : i64, tpu.core_type = #tpu.core_type<tc>, window_params = [{transform_indices = @transform_0, window_bounds = array<i64: 8, 1, 6, 192>}, {pipeline_mode = #tpu.pipeline_mode<synchronous>, transform_indices = @transform_1, window_bounds = array<i64: 32, 192>}, {pipeline_mode = #tpu.pipeline_mode<synchronous>, transform_indices = @transform_2, window_bounds = array<i64: 32, 192>}, {transform_indices = @transform_3, window_bounds = array<i64: 8, 1, 6, 64>}]} {
    %c0_i32 = arith.constant 0 : i32
    %0 = arith.cmpi eq, %arg1, %c0_i32 : i32
    %1 = arith.extui %0 : i1 to i32
    %c0_i32_0 = arith.constant 0 : i32
    %2 = arith.cmpi ne, %1, %c0_i32_0 : i32
    scf.if %2 {
      %cst_156 = arith.constant 0.000000e+00 : f32
      %397 = vector.broadcast %cst_156 : f32 to vector<6x32xf32>
      %c0_157 = arith.constant 0 : index
      %c0_158 = arith.constant 0 : index
      %398 = vector.load %arg6[%c0_157, %c0_158] : memref<6x32xf32, #tpu.memory_space<vmem>>, vector<6x32xf32>
      tpu.vector_store %arg6[%c0_157, %c0_158], %397 {strides = array<i32>} : memref<6x32xf32, #tpu.memory_space<vmem>>, vector<6x32xf32>,
      %cst_159 = arith.constant 0.000000e+00 : f32
      %399 = vector.broadcast %cst_159 : f32 to vector<6x32xf32>
      %c0_160 = arith.constant 0 : index
      %c0_161 = arith.constant 0 : index
      %400 = vector.load %arg7[%c0_160, %c0_161] : memref<6x32xf32, #tpu.memory_space<vmem>>, vector<6x32xf32>
      tpu.vector_store %arg7[%c0_160, %c0_161], %399 {strides = array<i32>} : memref<6x32xf32, #tpu.memory_space<vmem>>, vector<6x32xf32>,
    } else {
    }
    %c0 = arith.constant 0 : index
    %c0_1 = arith.constant 0 : index
    %3 = vector.load %arg3[%c0, %c0_1] : memref<32x192xf32, #tpu.memory_space<vmem>>, vector<32x192xf32>
    %c0_2 = arith.constant 0 : index
    %c0_3 = arith.constant 0 : index
    %4 = vector.load %arg4[%c0_2, %c0_3] : memref<32x192xf32, #tpu.memory_space<vmem>>, vector<32x192xf32>
    %c0_i32_4 = arith.constant 0 : i32
    %c0_5 = arith.constant 0 : index
    %c0_6 = arith.constant 0 : index
    %5 = vector.load %arg6[%c0_5, %c0_6] : memref<6x32xf32, #tpu.memory_space<vmem>>, vector<6x32xf32>
    %c0_7 = arith.constant 0 : index
    %c0_8 = arith.constant 0 : index
    %6 = vector.load %arg7[%c0_7, %c0_8] : memref<6x32xf32, #tpu.memory_space<vmem>>, vector<6x32xf32>
    %7 = arith.index_cast %c0_i32_4 : i32 to index
    %c0_9 = arith.constant 0 : index
    %c0_10 = arith.constant 0 : index
    %c0_11 = arith.constant 0 : index
    %8 = vector.load %arg2[%7, %c0_9, %c0_10, %c0_11] : memref<8x1x6x192xf32, #tpu.memory_space<vmem>>, vector<1x1x6x192xf32>
    %9 = vector.shape_cast %8 : vector<1x1x6x192xf32> to vector<1x6x192xf32>
    %10 = vector.shape_cast %9 : vector<1x6x192xf32> to vector<6x192xf32>
    %cst = arith.constant dense<0.000000e+00> : vector<6x192xf32>
    %11 = tpu.matmul %5, %3, %cst {dimension_numbers = #tpu.dot_dimension_numbers<[1], [0], [0], [1], [0, 0, 1, 1], [], []>} : vector<6x32xf32>, vector<32x192xf32>, vector<6x192xf32> -> vector<6x192xf32>
    %12 = arith.addf %10, %11 : vector<6x192xf32>
    %cst_12 = arith.constant dense<0.000000e+00> : vector<6x192xf32>
    %13 = tpu.matmul %6, %4, %cst_12 {dimension_numbers = #tpu.dot_dimension_numbers<[1], [0], [0], [1], [0, 0, 1, 1], [], []>} : vector<6x32xf32>, vector<32x192xf32>, vector<6x192xf32> -> vector<6x192xf32>
    %14 = arith.addf %12, %13 : vector<6x192xf32>
    %15 = vector.extract_strided_slice %14 {offsets = [0, 0], sizes = [6, 128], strides = [1, 1]} : vector<6x192xf32> to vector<6x128xf32>
    %16 = arith.negf %15 : vector<6x128xf32>
    %17 = math.exp %16 : vector<6x128xf32>
    %cst_13 = arith.constant 1.000000e+00 : f32
    %18 = vector.broadcast %cst_13 : f32 to vector<6x128xf32>
    %19 = arith.addf %18, %17 : vector<6x128xf32>
    %20 = arith.divf %18, %19 : vector<6x128xf32>
    %21 = vector.extract_strided_slice %14 {offsets = [0, 128], sizes = [6, 64], strides = [1, 1]} : vector<6x192xf32> to vector<6x64xf32>
    %22 = math.tanh %21 : vector<6x64xf32>
    %23 = vector.extract_strided_slice %20 {offsets = [0, 0], sizes = [6, 32], strides = [1, 1]} : vector<6x128xf32> to vector<6x32xf32>
    %24 = vector.extract_strided_slice %20 {offsets = [0, 32], sizes = [6, 32], strides = [1, 1]} : vector<6x128xf32> to vector<6x32xf32>
    %25 = vector.extract_strided_slice %20 {offsets = [0, 64], sizes = [6, 32], strides = [1, 1]} : vector<6x128xf32> to vector<6x32xf32>
    %26 = vector.extract_strided_slice %20 {offsets = [0, 96], sizes = [6, 32], strides = [1, 1]} : vector<6x128xf32> to vector<6x32xf32>
    %27 = vector.extract_strided_slice %22 {offsets = [0, 0], sizes = [6, 32], strides = [1, 1]} : vector<6x64xf32> to vector<6x32xf32>
    %28 = vector.extract_strided_slice %22 {offsets = [0, 32], sizes = [6, 32], strides = [1, 1]} : vector<6x64xf32> to vector<6x32xf32>
    %cst_14 = arith.constant 1.000000e+00 : f32
    %29 = vector.broadcast %cst_14 : f32 to vector<6x32xf32>
    %30 = arith.subf %29, %23 : vector<6x32xf32>
    %31 = arith.mulf %30, %5 : vector<6x32xf32>
    %32 = arith.mulf %23, %27 : vector<6x32xf32>
    %33 = arith.addf %31, %32 : vector<6x32xf32>
    %34 = math.tanh %33 : vector<6x32xf32>
    %35 = arith.mulf %34, %24 : vector<6x32xf32>
    %cst_15 = arith.constant 1.000000e+00 : f32
    %36 = vector.broadcast %cst_15 : f32 to vector<6x32xf32>
    %37 = arith.subf %36, %25 : vector<6x32xf32>
    %38 = arith.mulf %37, %6 : vector<6x32xf32>
    %39 = arith.mulf %25, %28 : vector<6x32xf32>
    %40 = arith.addf %38, %39 : vector<6x32xf32>
    %41 = math.tanh %40 : vector<6x32xf32>
    %42 = arith.mulf %41, %26 : vector<6x32xf32>
    %43 = tpu.concatenate %35, %42 in 1 : vector<6x32xf32>, vector<6x32xf32> -> vector<6x64xf32>
    %44 = vector.shape_cast %43 : vector<6x64xf32> to vector<1x6x64xf32>
    %45 = arith.index_cast %c0_i32_4 : i32 to index
    %c0_16 = arith.constant 0 : index
    %c0_17 = arith.constant 0 : index
    %c0_18 = arith.constant 0 : index
    %46 = vector.load %arg5[%45, %c0_16, %c0_17, %c0_18] : memref<8x1x6x64xf32, #tpu.memory_space<vmem>>, vector<1x1x6x64xf32>
    %47 = vector.shape_cast %46 : vector<1x1x6x64xf32> to vector<1x6x64xf32>
    %48 = vector.shape_cast %44 : vector<1x6x64xf32> to vector<1x1x6x64xf32>
    tpu.vector_store %arg5[%45, %c0_16, %c0_17, %c0_18], %48 {strides = array<i32>} : memref<8x1x6x64xf32, #tpu.memory_space<vmem>>, vector<1x1x6x64xf32>,
    %c0_19 = arith.constant 0 : index
    %c0_20 = arith.constant 0 : index
    %49 = vector.load %arg6[%c0_19, %c0_20] : memref<6x32xf32, #tpu.memory_space<vmem>>, vector<6x32xf32>
    tpu.vector_store %arg6[%c0_19, %c0_20], %35 {strides = array<i32>} : memref<6x32xf32, #tpu.memory_space<vmem>>, vector<6x32xf32>,
    %50 = vector.extract_strided_slice %42 {offsets = [5, 0], sizes = [1, 32], strides = [1, 1]} : vector<6x32xf32> to vector<1x32xf32>
    %51 = vector.extract_strided_slice %42 {offsets = [0, 0], sizes = [5, 32], strides = [1, 1]} : vector<6x32xf32> to vector<5x32xf32>
    %52 = tpu.concatenate %50, %51 in 0 : vector<1x32xf32>, vector<5x32xf32> -> vector<6x32xf32>
    %c0_21 = arith.constant 0 : index
    %c0_22 = arith.constant 0 : index
    %53 = vector.load %arg7[%c0_21, %c0_22] : memref<6x32xf32, #tpu.memory_space<vmem>>, vector<6x32xf32>
    tpu.vector_store %arg7[%c0_21, %c0_22], %52 {strides = array<i32>} : memref<6x32xf32, #tpu.memory_space<vmem>>, vector<6x32xf32>,
    %c1_i32 = arith.constant 1 : i32
    %c0_23 = arith.constant 0 : index
    %c0_24 = arith.constant 0 : index
    %54 = vector.load %arg6[%c0_23, %c0_24] : memref<6x32xf32, #tpu.memory_space<vmem>>, vector<6x32xf32>
    %c0_25 = arith.constant 0 : index
    %c0_26 = arith.constant 0 : index
    %55 = vector.load %arg7[%c0_25, %c0_26] : memref<6x32xf32, #tpu.memory_space<vmem>>, vector<6x32xf32>
    %56 = arith.index_cast %c1_i32 : i32 to index
    %c0_27 = arith.constant 0 : index
    %c0_28 = arith.constant 0 : index
    %c0_29 = arith.constant 0 : index
    %57 = vector.load %arg2[%56, %c0_27, %c0_28, %c0_29] : memref<8x1x6x192xf32, #tpu.memory_space<vmem>>, vector<1x1x6x192xf32>
    %58 = vector.shape_cast %57 : vector<1x1x6x192xf32> to vector<1x6x192xf32>
    %59 = vector.shape_cast %58 : vector<1x6x192xf32> to vector<6x192xf32>
    %cst_30 = arith.constant dense<0.000000e+00> : vector<6x192xf32>
    %60 = tpu.matmul %54, %3, %cst_30 {dimension_numbers = #tpu.dot_dimension_numbers<[1], [0], [0], [1], [0, 0, 1, 1], [], []>} : vector<6x32xf32>, vector<32x192xf32>, vector<6x192xf32> -> vector<6x192xf32>
    %61 = arith.addf %59, %60 : vector<6x192xf32>
    %cst_31 = arith.constant dense<0.000000e+00> : vector<6x192xf32>
    %62 = tpu.matmul %55, %4, %cst_31 {dimension_numbers = #tpu.dot_dimension_numbers<[1], [0], [0], [1], [0, 0, 1, 1], [], []>} : vector<6x32xf32>, vector<32x192xf32>, vector<6x192xf32> -> vector<6x192xf32>
    %63 = arith.addf %61, %62 : vector<6x192xf32>
    %64 = vector.extract_strided_slice %63 {offsets = [0, 0], sizes = [6, 128], strides = [1, 1]} : vector<6x192xf32> to vector<6x128xf32>
    %65 = arith.negf %64 : vector<6x128xf32>
    %66 = math.exp %65 : vector<6x128xf32>
    %cst_32 = arith.constant 1.000000e+00 : f32
    %67 = vector.broadcast %cst_32 : f32 to vector<6x128xf32>
    %68 = arith.addf %67, %66 : vector<6x128xf32>
    %69 = arith.divf %67, %68 : vector<6x128xf32>
    %70 = vector.extract_strided_slice %63 {offsets = [0, 128], sizes = [6, 64], strides = [1, 1]} : vector<6x192xf32> to vector<6x64xf32>
    %71 = math.tanh %70 : vector<6x64xf32>
    %72 = vector.extract_strided_slice %69 {offsets = [0, 0], sizes = [6, 32], strides = [1, 1]} : vector<6x128xf32> to vector<6x32xf32>
    %73 = vector.extract_strided_slice %69 {offsets = [0, 32], sizes = [6, 32], strides = [1, 1]} : vector<6x128xf32> to vector<6x32xf32>
    %74 = vector.extract_strided_slice %69 {offsets = [0, 64], sizes = [6, 32], strides = [1, 1]} : vector<6x128xf32> to vector<6x32xf32>
    %75 = vector.extract_strided_slice %69 {offsets = [0, 96], sizes = [6, 32], strides = [1, 1]} : vector<6x128xf32> to vector<6x32xf32>
    %76 = vector.extract_strided_slice %71 {offsets = [0, 0], sizes = [6, 32], strides = [1, 1]} : vector<6x64xf32> to vector<6x32xf32>
    %77 = vector.extract_strided_slice %71 {offsets = [0, 32], sizes = [6, 32], strides = [1, 1]} : vector<6x64xf32> to vector<6x32xf32>
    %cst_33 = arith.constant 1.000000e+00 : f32
    %78 = vector.broadcast %cst_33 : f32 to vector<6x32xf32>
    %79 = arith.subf %78, %72 : vector<6x32xf32>
    %80 = arith.mulf %79, %54 : vector<6x32xf32>
    %81 = arith.mulf %72, %76 : vector<6x32xf32>
    %82 = arith.addf %80, %81 : vector<6x32xf32>
    %83 = math.tanh %82 : vector<6x32xf32>
    %84 = arith.mulf %83, %73 : vector<6x32xf32>
    %cst_34 = arith.constant 1.000000e+00 : f32
    %85 = vector.broadcast %cst_34 : f32 to vector<6x32xf32>
    %86 = arith.subf %85, %74 : vector<6x32xf32>
    %87 = arith.mulf %86, %55 : vector<6x32xf32>
    %88 = arith.mulf %74, %77 : vector<6x32xf32>
    %89 = arith.addf %87, %88 : vector<6x32xf32>
    %90 = math.tanh %89 : vector<6x32xf32>
    %91 = arith.mulf %90, %75 : vector<6x32xf32>
    %92 = tpu.concatenate %84, %91 in 1 : vector<6x32xf32>, vector<6x32xf32> -> vector<6x64xf32>
    %93 = vector.shape_cast %92 : vector<6x64xf32> to vector<1x6x64xf32>
    %94 = arith.index_cast %c1_i32 : i32 to index
    %c0_35 = arith.constant 0 : index
    %c0_36 = arith.constant 0 : index
    %c0_37 = arith.constant 0 : index
    %95 = vector.load %arg5[%94, %c0_35, %c0_36, %c0_37] : memref<8x1x6x64xf32, #tpu.memory_space<vmem>>, vector<1x1x6x64xf32>
    %96 = vector.shape_cast %95 : vector<1x1x6x64xf32> to vector<1x6x64xf32>
    %97 = vector.shape_cast %93 : vector<1x6x64xf32> to vector<1x1x6x64xf32>
    tpu.vector_store %arg5[%94, %c0_35, %c0_36, %c0_37], %97 {strides = array<i32>} : memref<8x1x6x64xf32, #tpu.memory_space<vmem>>, vector<1x1x6x64xf32>,
    %c0_38 = arith.constant 0 : index
    %c0_39 = arith.constant 0 : index
    %98 = vector.load %arg6[%c0_38, %c0_39] : memref<6x32xf32, #tpu.memory_space<vmem>>, vector<6x32xf32>
    tpu.vector_store %arg6[%c0_38, %c0_39], %84 {strides = array<i32>} : memref<6x32xf32, #tpu.memory_space<vmem>>, vector<6x32xf32>,
    %99 = vector.extract_strided_slice %91 {offsets = [5, 0], sizes = [1, 32], strides = [1, 1]} : vector<6x32xf32> to vector<1x32xf32>
    %100 = vector.extract_strided_slice %91 {offsets = [0, 0], sizes = [5, 32], strides = [1, 1]} : vector<6x32xf32> to vector<5x32xf32>
    %101 = tpu.concatenate %99, %100 in 0 : vector<1x32xf32>, vector<5x32xf32> -> vector<6x32xf32>
    %c0_40 = arith.constant 0 : index
    %c0_41 = arith.constant 0 : index
    %102 = vector.load %arg7[%c0_40, %c0_41] : memref<6x32xf32, #tpu.memory_space<vmem>>, vector<6x32xf32>
    tpu.vector_store %arg7[%c0_40, %c0_41], %101 {strides = array<i32>} : memref<6x32xf32, #tpu.memory_space<vmem>>, vector<6x32xf32>,
    %c2_i32 = arith.constant 2 : i32
    %c0_42 = arith.constant 0 : index
    %c0_43 = arith.constant 0 : index
    %103 = vector.load %arg6[%c0_42, %c0_43] : memref<6x32xf32, #tpu.memory_space<vmem>>, vector<6x32xf32>
    %c0_44 = arith.constant 0 : index
    %c0_45 = arith.constant 0 : index
    %104 = vector.load %arg7[%c0_44, %c0_45] : memref<6x32xf32, #tpu.memory_space<vmem>>, vector<6x32xf32>
    %105 = arith.index_cast %c2_i32 : i32 to index
    %c0_46 = arith.constant 0 : index
    %c0_47 = arith.constant 0 : index
    %c0_48 = arith.constant 0 : index
    %106 = vector.load %arg2[%105, %c0_46, %c0_47, %c0_48] : memref<8x1x6x192xf32, #tpu.memory_space<vmem>>, vector<1x1x6x192xf32>
    %107 = vector.shape_cast %106 : vector<1x1x6x192xf32> to vector<1x6x192xf32>
    %108 = vector.shape_cast %107 : vector<1x6x192xf32> to vector<6x192xf32>
    %cst_49 = arith.constant dense<0.000000e+00> : vector<6x192xf32>
    %109 = tpu.matmul %103, %3, %cst_49 {dimension_numbers = #tpu.dot_dimension_numbers<[1], [0], [0], [1], [0, 0, 1, 1], [], []>} : vector<6x32xf32>, vector<32x192xf32>, vector<6x192xf32> -> vector<6x192xf32>
    %110 = arith.addf %108, %109 : vector<6x192xf32>
    %cst_50 = arith.constant dense<0.000000e+00> : vector<6x192xf32>
    %111 = tpu.matmul %104, %4, %cst_50 {dimension_numbers = #tpu.dot_dimension_numbers<[1], [0], [0], [1], [0, 0, 1, 1], [], []>} : vector<6x32xf32>, vector<32x192xf32>, vector<6x192xf32> -> vector<6x192xf32>
    %112 = arith.addf %110, %111 : vector<6x192xf32>
    %113 = vector.extract_strided_slice %112 {offsets = [0, 0], sizes = [6, 128], strides = [1, 1]} : vector<6x192xf32> to vector<6x128xf32>
    %114 = arith.negf %113 : vector<6x128xf32>
    %115 = math.exp %114 : vector<6x128xf32>
    %cst_51 = arith.constant 1.000000e+00 : f32
    %116 = vector.broadcast %cst_51 : f32 to vector<6x128xf32>
    %117 = arith.addf %116, %115 : vector<6x128xf32>
    %118 = arith.divf %116, %117 : vector<6x128xf32>
    %119 = vector.extract_strided_slice %112 {offsets = [0, 128], sizes = [6, 64], strides = [1, 1]} : vector<6x192xf32> to vector<6x64xf32>
    %120 = math.tanh %119 : vector<6x64xf32>
    %121 = vector.extract_strided_slice %118 {offsets = [0, 0], sizes = [6, 32], strides = [1, 1]} : vector<6x128xf32> to vector<6x32xf32>
    %122 = vector.extract_strided_slice %118 {offsets = [0, 32], sizes = [6, 32], strides = [1, 1]} : vector<6x128xf32> to vector<6x32xf32>
    %123 = vector.extract_strided_slice %118 {offsets = [0, 64], sizes = [6, 32], strides = [1, 1]} : vector<6x128xf32> to vector<6x32xf32>
    %124 = vector.extract_strided_slice %118 {offsets = [0, 96], sizes = [6, 32], strides = [1, 1]} : vector<6x128xf32> to vector<6x32xf32>
    %125 = vector.extract_strided_slice %120 {offsets = [0, 0], sizes = [6, 32], strides = [1, 1]} : vector<6x64xf32> to vector<6x32xf32>
    %126 = vector.extract_strided_slice %120 {offsets = [0, 32], sizes = [6, 32], strides = [1, 1]} : vector<6x64xf32> to vector<6x32xf32>
    %cst_52 = arith.constant 1.000000e+00 : f32
    %127 = vector.broadcast %cst_52 : f32 to vector<6x32xf32>
    %128 = arith.subf %127, %121 : vector<6x32xf32>
    %129 = arith.mulf %128, %103 : vector<6x32xf32>
    %130 = arith.mulf %121, %125 : vector<6x32xf32>
    %131 = arith.addf %129, %130 : vector<6x32xf32>
    %132 = math.tanh %131 : vector<6x32xf32>
    %133 = arith.mulf %132, %122 : vector<6x32xf32>
    %cst_53 = arith.constant 1.000000e+00 : f32
    %134 = vector.broadcast %cst_53 : f32 to vector<6x32xf32>
    %135 = arith.subf %134, %123 : vector<6x32xf32>
    %136 = arith.mulf %135, %104 : vector<6x32xf32>
    %137 = arith.mulf %123, %126 : vector<6x32xf32>
    %138 = arith.addf %136, %137 : vector<6x32xf32>
    %139 = math.tanh %138 : vector<6x32xf32>
    %140 = arith.mulf %139, %124 : vector<6x32xf32>
    %141 = tpu.concatenate %133, %140 in 1 : vector<6x32xf32>, vector<6x32xf32> -> vector<6x64xf32>
    %142 = vector.shape_cast %141 : vector<6x64xf32> to vector<1x6x64xf32>
    %143 = arith.index_cast %c2_i32 : i32 to index
    %c0_54 = arith.constant 0 : index
    %c0_55 = arith.constant 0 : index
    %c0_56 = arith.constant 0 : index
    %144 = vector.load %arg5[%143, %c0_54, %c0_55, %c0_56] : memref<8x1x6x64xf32, #tpu.memory_space<vmem>>, vector<1x1x6x64xf32>
    %145 = vector.shape_cast %144 : vector<1x1x6x64xf32> to vector<1x6x64xf32>
    %146 = vector.shape_cast %142 : vector<1x6x64xf32> to vector<1x1x6x64xf32>
    tpu.vector_store %arg5[%143, %c0_54, %c0_55, %c0_56], %146 {strides = array<i32>} : memref<8x1x6x64xf32, #tpu.memory_space<vmem>>, vector<1x1x6x64xf32>,
    %c0_57 = arith.constant 0 : index
    %c0_58 = arith.constant 0 : index
    %147 = vector.load %arg6[%c0_57, %c0_58] : memref<6x32xf32, #tpu.memory_space<vmem>>, vector<6x32xf32>
    tpu.vector_store %arg6[%c0_57, %c0_58], %133 {strides = array<i32>} : memref<6x32xf32, #tpu.memory_space<vmem>>, vector<6x32xf32>,
    %148 = vector.extract_strided_slice %140 {offsets = [5, 0], sizes = [1, 32], strides = [1, 1]} : vector<6x32xf32> to vector<1x32xf32>
    %149 = vector.extract_strided_slice %140 {offsets = [0, 0], sizes = [5, 32], strides = [1, 1]} : vector<6x32xf32> to vector<5x32xf32>
    %150 = tpu.concatenate %148, %149 in 0 : vector<1x32xf32>, vector<5x32xf32> -> vector<6x32xf32>
    %c0_59 = arith.constant 0 : index
    %c0_60 = arith.constant 0 : index
    %151 = vector.load %arg7[%c0_59, %c0_60] : memref<6x32xf32, #tpu.memory_space<vmem>>, vector<6x32xf32>
    tpu.vector_store %arg7[%c0_59, %c0_60], %150 {strides = array<i32>} : memref<6x32xf32, #tpu.memory_space<vmem>>, vector<6x32xf32>,
    %c3_i32 = arith.constant 3 : i32
    %c0_61 = arith.constant 0 : index
    %c0_62 = arith.constant 0 : index
    %152 = vector.load %arg6[%c0_61, %c0_62] : memref<6x32xf32, #tpu.memory_space<vmem>>, vector<6x32xf32>
    %c0_63 = arith.constant 0 : index
    %c0_64 = arith.constant 0 : index
    %153 = vector.load %arg7[%c0_63, %c0_64] : memref<6x32xf32, #tpu.memory_space<vmem>>, vector<6x32xf32>
    %154 = arith.index_cast %c3_i32 : i32 to index
    %c0_65 = arith.constant 0 : index
    %c0_66 = arith.constant 0 : index
    %c0_67 = arith.constant 0 : index
    %155 = vector.load %arg2[%154, %c0_65, %c0_66, %c0_67] : memref<8x1x6x192xf32, #tpu.memory_space<vmem>>, vector<1x1x6x192xf32>
    %156 = vector.shape_cast %155 : vector<1x1x6x192xf32> to vector<1x6x192xf32>
    %157 = vector.shape_cast %156 : vector<1x6x192xf32> to vector<6x192xf32>
    %cst_68 = arith.constant dense<0.000000e+00> : vector<6x192xf32>
    %158 = tpu.matmul %152, %3, %cst_68 {dimension_numbers = #tpu.dot_dimension_numbers<[1], [0], [0], [1], [0, 0, 1, 1], [], []>} : vector<6x32xf32>, vector<32x192xf32>, vector<6x192xf32> -> vector<6x192xf32>
    %159 = arith.addf %157, %158 : vector<6x192xf32>
    %cst_69 = arith.constant dense<0.000000e+00> : vector<6x192xf32>
    %160 = tpu.matmul %153, %4, %cst_69 {dimension_numbers = #tpu.dot_dimension_numbers<[1], [0], [0], [1], [0, 0, 1, 1], [], []>} : vector<6x32xf32>, vector<32x192xf32>, vector<6x192xf32> -> vector<6x192xf32>
    %161 = arith.addf %159, %160 : vector<6x192xf32>
    %162 = vector.extract_strided_slice %161 {offsets = [0, 0], sizes = [6, 128], strides = [1, 1]} : vector<6x192xf32> to vector<6x128xf32>
    %163 = arith.negf %162 : vector<6x128xf32>
    %164 = math.exp %163 : vector<6x128xf32>
    %cst_70 = arith.constant 1.000000e+00 : f32
    %165 = vector.broadcast %cst_70 : f32 to vector<6x128xf32>
    %166 = arith.addf %165, %164 : vector<6x128xf32>
    %167 = arith.divf %165, %166 : vector<6x128xf32>
    %168 = vector.extract_strided_slice %161 {offsets = [0, 128], sizes = [6, 64], strides = [1, 1]} : vector<6x192xf32> to vector<6x64xf32>
    %169 = math.tanh %168 : vector<6x64xf32>
    %170 = vector.extract_strided_slice %167 {offsets = [0, 0], sizes = [6, 32], strides = [1, 1]} : vector<6x128xf32> to vector<6x32xf32>
    %171 = vector.extract_strided_slice %167 {offsets = [0, 32], sizes = [6, 32], strides = [1, 1]} : vector<6x128xf32> to vector<6x32xf32>
    %172 = vector.extract_strided_slice %167 {offsets = [0, 64], sizes = [6, 32], strides = [1, 1]} : vector<6x128xf32> to vector<6x32xf32>
    %173 = vector.extract_strided_slice %167 {offsets = [0, 96], sizes = [6, 32], strides = [1, 1]} : vector<6x128xf32> to vector<6x32xf32>
    %174 = vector.extract_strided_slice %169 {offsets = [0, 0], sizes = [6, 32], strides = [1, 1]} : vector<6x64xf32> to vector<6x32xf32>
    %175 = vector.extract_strided_slice %169 {offsets = [0, 32], sizes = [6, 32], strides = [1, 1]} : vector<6x64xf32> to vector<6x32xf32>
    %cst_71 = arith.constant 1.000000e+00 : f32
    %176 = vector.broadcast %cst_71 : f32 to vector<6x32xf32>
    %177 = arith.subf %176, %170 : vector<6x32xf32>
    %178 = arith.mulf %177, %152 : vector<6x32xf32>
    %179 = arith.mulf %170, %174 : vector<6x32xf32>
    %180 = arith.addf %178, %179 : vector<6x32xf32>
    %181 = math.tanh %180 : vector<6x32xf32>
    %182 = arith.mulf %181, %171 : vector<6x32xf32>
    %cst_72 = arith.constant 1.000000e+00 : f32
    %183 = vector.broadcast %cst_72 : f32 to vector<6x32xf32>
    %184 = arith.subf %183, %172 : vector<6x32xf32>
    %185 = arith.mulf %184, %153 : vector<6x32xf32>
    %186 = arith.mulf %172, %175 : vector<6x32xf32>
    %187 = arith.addf %185, %186 : vector<6x32xf32>
    %188 = math.tanh %187 : vector<6x32xf32>
    %189 = arith.mulf %188, %173 : vector<6x32xf32>
    %190 = tpu.concatenate %182, %189 in 1 : vector<6x32xf32>, vector<6x32xf32> -> vector<6x64xf32>
    %191 = vector.shape_cast %190 : vector<6x64xf32> to vector<1x6x64xf32>
    %192 = arith.index_cast %c3_i32 : i32 to index
    %c0_73 = arith.constant 0 : index
    %c0_74 = arith.constant 0 : index
    %c0_75 = arith.constant 0 : index
    %193 = vector.load %arg5[%192, %c0_73, %c0_74, %c0_75] : memref<8x1x6x64xf32, #tpu.memory_space<vmem>>, vector<1x1x6x64xf32>
    %194 = vector.shape_cast %193 : vector<1x1x6x64xf32> to vector<1x6x64xf32>
    %195 = vector.shape_cast %191 : vector<1x6x64xf32> to vector<1x1x6x64xf32>
    tpu.vector_store %arg5[%192, %c0_73, %c0_74, %c0_75], %195 {strides = array<i32>} : memref<8x1x6x64xf32, #tpu.memory_space<vmem>>, vector<1x1x6x64xf32>,
    %c0_76 = arith.constant 0 : index
    %c0_77 = arith.constant 0 : index
    %196 = vector.load %arg6[%c0_76, %c0_77] : memref<6x32xf32, #tpu.memory_space<vmem>>, vector<6x32xf32>
    tpu.vector_store %arg6[%c0_76, %c0_77], %182 {strides = array<i32>} : memref<6x32xf32, #tpu.memory_space<vmem>>, vector<6x32xf32>,
    %197 = vector.extract_strided_slice %189 {offsets = [5, 0], sizes = [1, 32], strides = [1, 1]} : vector<6x32xf32> to vector<1x32xf32>
    %198 = vector.extract_strided_slice %189 {offsets = [0, 0], sizes = [5, 32], strides = [1, 1]} : vector<6x32xf32> to vector<5x32xf32>
    %199 = tpu.concatenate %197, %198 in 0 : vector<1x32xf32>, vector<5x32xf32> -> vector<6x32xf32>
    %c0_78 = arith.constant 0 : index
    %c0_79 = arith.constant 0 : index
    %200 = vector.load %arg7[%c0_78, %c0_79] : memref<6x32xf32, #tpu.memory_space<vmem>>, vector<6x32xf32>
    tpu.vector_store %arg7[%c0_78, %c0_79], %199 {strides = array<i32>} : memref<6x32xf32, #tpu.memory_space<vmem>>, vector<6x32xf32>,
    %c4_i32 = arith.constant 4 : i32
    %c0_80 = arith.constant 0 : index
    %c0_81 = arith.constant 0 : index
    %201 = vector.load %arg6[%c0_80, %c0_81] : memref<6x32xf32, #tpu.memory_space<vmem>>, vector<6x32xf32>
    %c0_82 = arith.constant 0 : index
    %c0_83 = arith.constant 0 : index
    %202 = vector.load %arg7[%c0_82, %c0_83] : memref<6x32xf32, #tpu.memory_space<vmem>>, vector<6x32xf32>
    %203 = arith.index_cast %c4_i32 : i32 to index
    %c0_84 = arith.constant 0 : index
    %c0_85 = arith.constant 0 : index
    %c0_86 = arith.constant 0 : index
    %204 = vector.load %arg2[%203, %c0_84, %c0_85, %c0_86] : memref<8x1x6x192xf32, #tpu.memory_space<vmem>>, vector<1x1x6x192xf32>
    %205 = vector.shape_cast %204 : vector<1x1x6x192xf32> to vector<1x6x192xf32>
    %206 = vector.shape_cast %205 : vector<1x6x192xf32> to vector<6x192xf32>
    %cst_87 = arith.constant dense<0.000000e+00> : vector<6x192xf32>
    %207 = tpu.matmul %201, %3, %cst_87 {dimension_numbers = #tpu.dot_dimension_numbers<[1], [0], [0], [1], [0, 0, 1, 1], [], []>} : vector<6x32xf32>, vector<32x192xf32>, vector<6x192xf32> -> vector<6x192xf32>
    %208 = arith.addf %206, %207 : vector<6x192xf32>
    %cst_88 = arith.constant dense<0.000000e+00> : vector<6x192xf32>
    %209 = tpu.matmul %202, %4, %cst_88 {dimension_numbers = #tpu.dot_dimension_numbers<[1], [0], [0], [1], [0, 0, 1, 1], [], []>} : vector<6x32xf32>, vector<32x192xf32>, vector<6x192xf32> -> vector<6x192xf32>
    %210 = arith.addf %208, %209 : vector<6x192xf32>
    %211 = vector.extract_strided_slice %210 {offsets = [0, 0], sizes = [6, 128], strides = [1, 1]} : vector<6x192xf32> to vector<6x128xf32>
    %212 = arith.negf %211 : vector<6x128xf32>
    %213 = math.exp %212 : vector<6x128xf32>
    %cst_89 = arith.constant 1.000000e+00 : f32
    %214 = vector.broadcast %cst_89 : f32 to vector<6x128xf32>
    %215 = arith.addf %214, %213 : vector<6x128xf32>
    %216 = arith.divf %214, %215 : vector<6x128xf32>
    %217 = vector.extract_strided_slice %210 {offsets = [0, 128], sizes = [6, 64], strides = [1, 1]} : vector<6x192xf32> to vector<6x64xf32>
    %218 = math.tanh %217 : vector<6x64xf32>
    %219 = vector.extract_strided_slice %216 {offsets = [0, 0], sizes = [6, 32], strides = [1, 1]} : vector<6x128xf32> to vector<6x32xf32>
    %220 = vector.extract_strided_slice %216 {offsets = [0, 32], sizes = [6, 32], strides = [1, 1]} : vector<6x128xf32> to vector<6x32xf32>
    %221 = vector.extract_strided_slice %216 {offsets = [0, 64], sizes = [6, 32], strides = [1, 1]} : vector<6x128xf32> to vector<6x32xf32>
    %222 = vector.extract_strided_slice %216 {offsets = [0, 96], sizes = [6, 32], strides = [1, 1]} : vector<6x128xf32> to vector<6x32xf32>
    %223 = vector.extract_strided_slice %218 {offsets = [0, 0], sizes = [6, 32], strides = [1, 1]} : vector<6x64xf32> to vector<6x32xf32>
    %224 = vector.extract_strided_slice %218 {offsets = [0, 32], sizes = [6, 32], strides = [1, 1]} : vector<6x64xf32> to vector<6x32xf32>
    %cst_90 = arith.constant 1.000000e+00 : f32
    %225 = vector.broadcast %cst_90 : f32 to vector<6x32xf32>
    %226 = arith.subf %225, %219 : vector<6x32xf32>
    %227 = arith.mulf %226, %201 : vector<6x32xf32>
    %228 = arith.mulf %219, %223 : vector<6x32xf32>
    %229 = arith.addf %227, %228 : vector<6x32xf32>
    %230 = math.tanh %229 : vector<6x32xf32>
    %231 = arith.mulf %230, %220 : vector<6x32xf32>
    %cst_91 = arith.constant 1.000000e+00 : f32
    %232 = vector.broadcast %cst_91 : f32 to vector<6x32xf32>
    %233 = arith.subf %232, %221 : vector<6x32xf32>
    %234 = arith.mulf %233, %202 : vector<6x32xf32>
    %235 = arith.mulf %221, %224 : vector<6x32xf32>
    %236 = arith.addf %234, %235 : vector<6x32xf32>
    %237 = math.tanh %236 : vector<6x32xf32>
    %238 = arith.mulf %237, %222 : vector<6x32xf32>
    %239 = tpu.concatenate %231, %238 in 1 : vector<6x32xf32>, vector<6x32xf32> -> vector<6x64xf32>
    %240 = vector.shape_cast %239 : vector<6x64xf32> to vector<1x6x64xf32>
    %241 = arith.index_cast %c4_i32 : i32 to index
    %c0_92 = arith.constant 0 : index
    %c0_93 = arith.constant 0 : index
    %c0_94 = arith.constant 0 : index
    %242 = vector.load %arg5[%241, %c0_92, %c0_93, %c0_94] : memref<8x1x6x64xf32, #tpu.memory_space<vmem>>, vector<1x1x6x64xf32>
    %243 = vector.shape_cast %242 : vector<1x1x6x64xf32> to vector<1x6x64xf32>
    %244 = vector.shape_cast %240 : vector<1x6x64xf32> to vector<1x1x6x64xf32>
    tpu.vector_store %arg5[%241, %c0_92, %c0_93, %c0_94], %244 {strides = array<i32>} : memref<8x1x6x64xf32, #tpu.memory_space<vmem>>, vector<1x1x6x64xf32>,
    %c0_95 = arith.constant 0 : index
    %c0_96 = arith.constant 0 : index
    %245 = vector.load %arg6[%c0_95, %c0_96] : memref<6x32xf32, #tpu.memory_space<vmem>>, vector<6x32xf32>
    tpu.vector_store %arg6[%c0_95, %c0_96], %231 {strides = array<i32>} : memref<6x32xf32, #tpu.memory_space<vmem>>, vector<6x32xf32>,
    %246 = vector.extract_strided_slice %238 {offsets = [5, 0], sizes = [1, 32], strides = [1, 1]} : vector<6x32xf32> to vector<1x32xf32>
    %247 = vector.extract_strided_slice %238 {offsets = [0, 0], sizes = [5, 32], strides = [1, 1]} : vector<6x32xf32> to vector<5x32xf32>
    %248 = tpu.concatenate %246, %247 in 0 : vector<1x32xf32>, vector<5x32xf32> -> vector<6x32xf32>
    %c0_97 = arith.constant 0 : index
    %c0_98 = arith.constant 0 : index
    %249 = vector.load %arg7[%c0_97, %c0_98] : memref<6x32xf32, #tpu.memory_space<vmem>>, vector<6x32xf32>
    tpu.vector_store %arg7[%c0_97, %c0_98], %248 {strides = array<i32>} : memref<6x32xf32, #tpu.memory_space<vmem>>, vector<6x32xf32>,
    %c5_i32 = arith.constant 5 : i32
    %c0_99 = arith.constant 0 : index
    %c0_100 = arith.constant 0 : index
    %250 = vector.load %arg6[%c0_99, %c0_100] : memref<6x32xf32, #tpu.memory_space<vmem>>, vector<6x32xf32>
    %c0_101 = arith.constant 0 : index
    %c0_102 = arith.constant 0 : index
    %251 = vector.load %arg7[%c0_101, %c0_102] : memref<6x32xf32, #tpu.memory_space<vmem>>, vector<6x32xf32>
    %252 = arith.index_cast %c5_i32 : i32 to index
    %c0_103 = arith.constant 0 : index
    %c0_104 = arith.constant 0 : index
    %c0_105 = arith.constant 0 : index
    %253 = vector.load %arg2[%252, %c0_103, %c0_104, %c0_105] : memref<8x1x6x192xf32, #tpu.memory_space<vmem>>, vector<1x1x6x192xf32>
    %254 = vector.shape_cast %253 : vector<1x1x6x192xf32> to vector<1x6x192xf32>
    %255 = vector.shape_cast %254 : vector<1x6x192xf32> to vector<6x192xf32>
    %cst_106 = arith.constant dense<0.000000e+00> : vector<6x192xf32>
    %256 = tpu.matmul %250, %3, %cst_106 {dimension_numbers = #tpu.dot_dimension_numbers<[1], [0], [0], [1], [0, 0, 1, 1], [], []>} : vector<6x32xf32>, vector<32x192xf32>, vector<6x192xf32> -> vector<6x192xf32>
    %257 = arith.addf %255, %256 : vector<6x192xf32>
    %cst_107 = arith.constant dense<0.000000e+00> : vector<6x192xf32>
    %258 = tpu.matmul %251, %4, %cst_107 {dimension_numbers = #tpu.dot_dimension_numbers<[1], [0], [0], [1], [0, 0, 1, 1], [], []>} : vector<6x32xf32>, vector<32x192xf32>, vector<6x192xf32> -> vector<6x192xf32>
    %259 = arith.addf %257, %258 : vector<6x192xf32>
    %260 = vector.extract_strided_slice %259 {offsets = [0, 0], sizes = [6, 128], strides = [1, 1]} : vector<6x192xf32> to vector<6x128xf32>
    %261 = arith.negf %260 : vector<6x128xf32>
    %262 = math.exp %261 : vector<6x128xf32>
    %cst_108 = arith.constant 1.000000e+00 : f32
    %263 = vector.broadcast %cst_108 : f32 to vector<6x128xf32>
    %264 = arith.addf %263, %262 : vector<6x128xf32>
    %265 = arith.divf %263, %264 : vector<6x128xf32>
    %266 = vector.extract_strided_slice %259 {offsets = [0, 128], sizes = [6, 64], strides = [1, 1]} : vector<6x192xf32> to vector<6x64xf32>
    %267 = math.tanh %266 : vector<6x64xf32>
    %268 = vector.extract_strided_slice %265 {offsets = [0, 0], sizes = [6, 32], strides = [1, 1]} : vector<6x128xf32> to vector<6x32xf32>
    %269 = vector.extract_strided_slice %265 {offsets = [0, 32], sizes = [6, 32], strides = [1, 1]} : vector<6x128xf32> to vector<6x32xf32>
    %270 = vector.extract_strided_slice %265 {offsets = [0, 64], sizes = [6, 32], strides = [1, 1]} : vector<6x128xf32> to vector<6x32xf32>
    %271 = vector.extract_strided_slice %265 {offsets = [0, 96], sizes = [6, 32], strides = [1, 1]} : vector<6x128xf32> to vector<6x32xf32>
    %272 = vector.extract_strided_slice %267 {offsets = [0, 0], sizes = [6, 32], strides = [1, 1]} : vector<6x64xf32> to vector<6x32xf32>
    %273 = vector.extract_strided_slice %267 {offsets = [0, 32], sizes = [6, 32], strides = [1, 1]} : vector<6x64xf32> to vector<6x32xf32>
    %cst_109 = arith.constant 1.000000e+00 : f32
    %274 = vector.broadcast %cst_109 : f32 to vector<6x32xf32>
    %275 = arith.subf %274, %268 : vector<6x32xf32>
    %276 = arith.mulf %275, %250 : vector<6x32xf32>
    %277 = arith.mulf %268, %272 : vector<6x32xf32>
    %278 = arith.addf %276, %277 : vector<6x32xf32>
    %279 = math.tanh %278 : vector<6x32xf32>
    %280 = arith.mulf %279, %269 : vector<6x32xf32>
    %cst_110 = arith.constant 1.000000e+00 : f32
    %281 = vector.broadcast %cst_110 : f32 to vector<6x32xf32>
    %282 = arith.subf %281, %270 : vector<6x32xf32>
    %283 = arith.mulf %282, %251 : vector<6x32xf32>
    %284 = arith.mulf %270, %273 : vector<6x32xf32>
    %285 = arith.addf %283, %284 : vector<6x32xf32>
    %286 = math.tanh %285 : vector<6x32xf32>
    %287 = arith.mulf %286, %271 : vector<6x32xf32>
    %288 = tpu.concatenate %280, %287 in 1 : vector<6x32xf32>, vector<6x32xf32> -> vector<6x64xf32>
    %289 = vector.shape_cast %288 : vector<6x64xf32> to vector<1x6x64xf32>
    %290 = arith.index_cast %c5_i32 : i32 to index
    %c0_111 = arith.constant 0 : index
    %c0_112 = arith.constant 0 : index
    %c0_113 = arith.constant 0 : index
    %291 = vector.load %arg5[%290, %c0_111, %c0_112, %c0_113] : memref<8x1x6x64xf32, #tpu.memory_space<vmem>>, vector<1x1x6x64xf32>
    %292 = vector.shape_cast %291 : vector<1x1x6x64xf32> to vector<1x6x64xf32>
    %293 = vector.shape_cast %289 : vector<1x6x64xf32> to vector<1x1x6x64xf32>
    tpu.vector_store %arg5[%290, %c0_111, %c0_112, %c0_113], %293 {strides = array<i32>} : memref<8x1x6x64xf32, #tpu.memory_space<vmem>>, vector<1x1x6x64xf32>,
    %c0_114 = arith.constant 0 : index
    %c0_115 = arith.constant 0 : index
    %294 = vector.load %arg6[%c0_114, %c0_115] : memref<6x32xf32, #tpu.memory_space<vmem>>, vector<6x32xf32>
    tpu.vector_store %arg6[%c0_114, %c0_115], %280 {strides = array<i32>} : memref<6x32xf32, #tpu.memory_space<vmem>>, vector<6x32xf32>,
    %295 = vector.extract_strided_slice %287 {offsets = [5, 0], sizes = [1, 32], strides = [1, 1]} : vector<6x32xf32> to vector<1x32xf32>
    %296 = vector.extract_strided_slice %287 {offsets = [0, 0], sizes = [5, 32], strides = [1, 1]} : vector<6x32xf32> to vector<5x32xf32>
    %297 = tpu.concatenate %295, %296 in 0 : vector<1x32xf32>, vector<5x32xf32> -> vector<6x32xf32>
    %c0_116 = arith.constant 0 : index
    %c0_117 = arith.constant 0 : index
    %298 = vector.load %arg7[%c0_116, %c0_117] : memref<6x32xf32, #tpu.memory_space<vmem>>, vector<6x32xf32>
    tpu.vector_store %arg7[%c0_116, %c0_117], %297 {strides = array<i32>} : memref<6x32xf32, #tpu.memory_space<vmem>>, vector<6x32xf32>,
    %c6_i32 = arith.constant 6 : i32
    %c0_118 = arith.constant 0 : index
    %c0_119 = arith.constant 0 : index
    %299 = vector.load %arg6[%c0_118, %c0_119] : memref<6x32xf32, #tpu.memory_space<vmem>>, vector<6x32xf32>
    %c0_120 = arith.constant 0 : index
    %c0_121 = arith.constant 0 : index
    %300 = vector.load %arg7[%c0_120, %c0_121] : memref<6x32xf32, #tpu.memory_space<vmem>>, vector<6x32xf32>
    %301 = arith.index_cast %c6_i32 : i32 to index
    %c0_122 = arith.constant 0 : index
    %c0_123 = arith.constant 0 : index
    %c0_124 = arith.constant 0 : index
    %302 = vector.load %arg2[%301, %c0_122, %c0_123, %c0_124] : memref<8x1x6x192xf32, #tpu.memory_space<vmem>>, vector<1x1x6x192xf32>
    %303 = vector.shape_cast %302 : vector<1x1x6x192xf32> to vector<1x6x192xf32>
    %304 = vector.shape_cast %303 : vector<1x6x192xf32> to vector<6x192xf32>
    %cst_125 = arith.constant dense<0.000000e+00> : vector<6x192xf32>
    %305 = tpu.matmul %299, %3, %cst_125 {dimension_numbers = #tpu.dot_dimension_numbers<[1], [0], [0], [1], [0, 0, 1, 1], [], []>} : vector<6x32xf32>, vector<32x192xf32>, vector<6x192xf32> -> vector<6x192xf32>
    %306 = arith.addf %304, %305 : vector<6x192xf32>
    %cst_126 = arith.constant dense<0.000000e+00> : vector<6x192xf32>
    %307 = tpu.matmul %300, %4, %cst_126 {dimension_numbers = #tpu.dot_dimension_numbers<[1], [0], [0], [1], [0, 0, 1, 1], [], []>} : vector<6x32xf32>, vector<32x192xf32>, vector<6x192xf32> -> vector<6x192xf32>
    %308 = arith.addf %306, %307 : vector<6x192xf32>
    %309 = vector.extract_strided_slice %308 {offsets = [0, 0], sizes = [6, 128], strides = [1, 1]} : vector<6x192xf32> to vector<6x128xf32>
    %310 = arith.negf %309 : vector<6x128xf32>
    %311 = math.exp %310 : vector<6x128xf32>
    %cst_127 = arith.constant 1.000000e+00 : f32
    %312 = vector.broadcast %cst_127 : f32 to vector<6x128xf32>
    %313 = arith.addf %312, %311 : vector<6x128xf32>
    %314 = arith.divf %312, %313 : vector<6x128xf32>
    %315 = vector.extract_strided_slice %308 {offsets = [0, 128], sizes = [6, 64], strides = [1, 1]} : vector<6x192xf32> to vector<6x64xf32>
    %316 = math.tanh %315 : vector<6x64xf32>
    %317 = vector.extract_strided_slice %314 {offsets = [0, 0], sizes = [6, 32], strides = [1, 1]} : vector<6x128xf32> to vector<6x32xf32>
    %318 = vector.extract_strided_slice %314 {offsets = [0, 32], sizes = [6, 32], strides = [1, 1]} : vector<6x128xf32> to vector<6x32xf32>
    %319 = vector.extract_strided_slice %314 {offsets = [0, 64], sizes = [6, 32], strides = [1, 1]} : vector<6x128xf32> to vector<6x32xf32>
    %320 = vector.extract_strided_slice %314 {offsets = [0, 96], sizes = [6, 32], strides = [1, 1]} : vector<6x128xf32> to vector<6x32xf32>
    %321 = vector.extract_strided_slice %316 {offsets = [0, 0], sizes = [6, 32], strides = [1, 1]} : vector<6x64xf32> to vector<6x32xf32>
    %322 = vector.extract_strided_slice %316 {offsets = [0, 32], sizes = [6, 32], strides = [1, 1]} : vector<6x64xf32> to vector<6x32xf32>
    %cst_128 = arith.constant 1.000000e+00 : f32
    %323 = vector.broadcast %cst_128 : f32 to vector<6x32xf32>
    %324 = arith.subf %323, %317 : vector<6x32xf32>
    %325 = arith.mulf %324, %299 : vector<6x32xf32>
    %326 = arith.mulf %317, %321 : vector<6x32xf32>
    %327 = arith.addf %325, %326 : vector<6x32xf32>
    %328 = math.tanh %327 : vector<6x32xf32>
    %329 = arith.mulf %328, %318 : vector<6x32xf32>
    %cst_129 = arith.constant 1.000000e+00 : f32
    %330 = vector.broadcast %cst_129 : f32 to vector<6x32xf32>
    %331 = arith.subf %330, %319 : vector<6x32xf32>
    %332 = arith.mulf %331, %300 : vector<6x32xf32>
    %333 = arith.mulf %319, %322 : vector<6x32xf32>
    %334 = arith.addf %332, %333 : vector<6x32xf32>
    %335 = math.tanh %334 : vector<6x32xf32>
    %336 = arith.mulf %335, %320 : vector<6x32xf32>
    %337 = tpu.concatenate %329, %336 in 1 : vector<6x32xf32>, vector<6x32xf32> -> vector<6x64xf32>
    %338 = vector.shape_cast %337 : vector<6x64xf32> to vector<1x6x64xf32>
    %339 = arith.index_cast %c6_i32 : i32 to index
    %c0_130 = arith.constant 0 : index
    %c0_131 = arith.constant 0 : index
    %c0_132 = arith.constant 0 : index
    %340 = vector.load %arg5[%339, %c0_130, %c0_131, %c0_132] : memref<8x1x6x64xf32, #tpu.memory_space<vmem>>, vector<1x1x6x64xf32>
    %341 = vector.shape_cast %340 : vector<1x1x6x64xf32> to vector<1x6x64xf32>
    %342 = vector.shape_cast %338 : vector<1x6x64xf32> to vector<1x1x6x64xf32>
    tpu.vector_store %arg5[%339, %c0_130, %c0_131, %c0_132], %342 {strides = array<i32>} : memref<8x1x6x64xf32, #tpu.memory_space<vmem>>, vector<1x1x6x64xf32>,
    %c0_133 = arith.constant 0 : index
    %c0_134 = arith.constant 0 : index
    %343 = vector.load %arg6[%c0_133, %c0_134] : memref<6x32xf32, #tpu.memory_space<vmem>>, vector<6x32xf32>
    tpu.vector_store %arg6[%c0_133, %c0_134], %329 {strides = array<i32>} : memref<6x32xf32, #tpu.memory_space<vmem>>, vector<6x32xf32>,
    %344 = vector.extract_strided_slice %336 {offsets = [5, 0], sizes = [1, 32], strides = [1, 1]} : vector<6x32xf32> to vector<1x32xf32>
    %345 = vector.extract_strided_slice %336 {offsets = [0, 0], sizes = [5, 32], strides = [1, 1]} : vector<6x32xf32> to vector<5x32xf32>
    %346 = tpu.concatenate %344, %345 in 0 : vector<1x32xf32>, vector<5x32xf32> -> vector<6x32xf32>
    %c0_135 = arith.constant 0 : index
    %c0_136 = arith.constant 0 : index
    %347 = vector.load %arg7[%c0_135, %c0_136] : memref<6x32xf32, #tpu.memory_space<vmem>>, vector<6x32xf32>
    tpu.vector_store %arg7[%c0_135, %c0_136], %346 {strides = array<i32>} : memref<6x32xf32, #tpu.memory_space<vmem>>, vector<6x32xf32>,
    %c7_i32 = arith.constant 7 : i32
    %c0_137 = arith.constant 0 : index
    %c0_138 = arith.constant 0 : index
    %348 = vector.load %arg6[%c0_137, %c0_138] : memref<6x32xf32, #tpu.memory_space<vmem>>, vector<6x32xf32>
    %c0_139 = arith.constant 0 : index
    %c0_140 = arith.constant 0 : index
    %349 = vector.load %arg7[%c0_139, %c0_140] : memref<6x32xf32, #tpu.memory_space<vmem>>, vector<6x32xf32>
    %350 = arith.index_cast %c7_i32 : i32 to index
    %c0_141 = arith.constant 0 : index
    %c0_142 = arith.constant 0 : index
    %c0_143 = arith.constant 0 : index
    %351 = vector.load %arg2[%350, %c0_141, %c0_142, %c0_143] : memref<8x1x6x192xf32, #tpu.memory_space<vmem>>, vector<1x1x6x192xf32>
    %352 = vector.shape_cast %351 : vector<1x1x6x192xf32> to vector<1x6x192xf32>
    %353 = vector.shape_cast %352 : vector<1x6x192xf32> to vector<6x192xf32>
    %cst_144 = arith.constant dense<0.000000e+00> : vector<6x192xf32>
    %354 = tpu.matmul %348, %3, %cst_144 {dimension_numbers = #tpu.dot_dimension_numbers<[1], [0], [0], [1], [0, 0, 1, 1], [], []>} : vector<6x32xf32>, vector<32x192xf32>, vector<6x192xf32> -> vector<6x192xf32>
    %355 = arith.addf %353, %354 : vector<6x192xf32>
    %cst_145 = arith.constant dense<0.000000e+00> : vector<6x192xf32>
    %356 = tpu.matmul %349, %4, %cst_145 {dimension_numbers = #tpu.dot_dimension_numbers<[1], [0], [0], [1], [0, 0, 1, 1], [], []>} : vector<6x32xf32>, vector<32x192xf32>, vector<6x192xf32> -> vector<6x192xf32>
    %357 = arith.addf %355, %356 : vector<6x192xf32>
    %358 = vector.extract_strided_slice %357 {offsets = [0, 0], sizes = [6, 128], strides = [1, 1]} : vector<6x192xf32> to vector<6x128xf32>
    %359 = arith.negf %358 : vector<6x128xf32>
    %360 = math.exp %359 : vector<6x128xf32>
    %cst_146 = arith.constant 1.000000e+00 : f32
    %361 = vector.broadcast %cst_146 : f32 to vector<6x128xf32>
    %362 = arith.addf %361, %360 : vector<6x128xf32>
    %363 = arith.divf %361, %362 : vector<6x128xf32>
    %364 = vector.extract_strided_slice %357 {offsets = [0, 128], sizes = [6, 64], strides = [1, 1]} : vector<6x192xf32> to vector<6x64xf32>
    %365 = math.tanh %364 : vector<6x64xf32>
    %366 = vector.extract_strided_slice %363 {offsets = [0, 0], sizes = [6, 32], strides = [1, 1]} : vector<6x128xf32> to vector<6x32xf32>
    %367 = vector.extract_strided_slice %363 {offsets = [0, 32], sizes = [6, 32], strides = [1, 1]} : vector<6x128xf32> to vector<6x32xf32>
    %368 = vector.extract_strided_slice %363 {offsets = [0, 64], sizes = [6, 32], strides = [1, 1]} : vector<6x128xf32> to vector<6x32xf32>
    %369 = vector.extract_strided_slice %363 {offsets = [0, 96], sizes = [6, 32], strides = [1, 1]} : vector<6x128xf32> to vector<6x32xf32>
    %370 = vector.extract_strided_slice %365 {offsets = [0, 0], sizes = [6, 32], strides = [1, 1]} : vector<6x64xf32> to vector<6x32xf32>
    %371 = vector.extract_strided_slice %365 {offsets = [0, 32], sizes = [6, 32], strides = [1, 1]} : vector<6x64xf32> to vector<6x32xf32>
    %cst_147 = arith.constant 1.000000e+00 : f32
    %372 = vector.broadcast %cst_147 : f32 to vector<6x32xf32>
    %373 = arith.subf %372, %366 : vector<6x32xf32>
    %374 = arith.mulf %373, %348 : vector<6x32xf32>
    %375 = arith.mulf %366, %370 : vector<6x32xf32>
    %376 = arith.addf %374, %375 : vector<6x32xf32>
    %377 = math.tanh %376 : vector<6x32xf32>
    %378 = arith.mulf %377, %367 : vector<6x32xf32>
    %cst_148 = arith.constant 1.000000e+00 : f32
    %379 = vector.broadcast %cst_148 : f32 to vector<6x32xf32>
    %380 = arith.subf %379, %368 : vector<6x32xf32>
    %381 = arith.mulf %380, %349 : vector<6x32xf32>
    %382 = arith.mulf %368, %371 : vector<6x32xf32>
    %383 = arith.addf %381, %382 : vector<6x32xf32>
    %384 = math.tanh %383 : vector<6x32xf32>
    %385 = arith.mulf %384, %369 : vector<6x32xf32>
    %386 = tpu.concatenate %378, %385 in 1 : vector<6x32xf32>, vector<6x32xf32> -> vector<6x64xf32>
    %387 = vector.shape_cast %386 : vector<6x64xf32> to vector<1x6x64xf32>
    %388 = arith.index_cast %c7_i32 : i32 to index
    %c0_149 = arith.constant 0 : index
    %c0_150 = arith.constant 0 : index
    %c0_151 = arith.constant 0 : index
    %389 = vector.load %arg5[%388, %c0_149, %c0_150, %c0_151] : memref<8x1x6x64xf32, #tpu.memory_space<vmem>>, vector<1x1x6x64xf32>
    %390 = vector.shape_cast %389 : vector<1x1x6x64xf32> to vector<1x6x64xf32>
    %391 = vector.shape_cast %387 : vector<1x6x64xf32> to vector<1x1x6x64xf32>
    tpu.vector_store %arg5[%388, %c0_149, %c0_150, %c0_151], %391 {strides = array<i32>} : memref<8x1x6x64xf32, #tpu.memory_space<vmem>>, vector<1x1x6x64xf32>,
    %c0_152 = arith.constant 0 : index
    %c0_153 = arith.constant 0 : index
    %392 = vector.load %arg6[%c0_152, %c0_153] : memref<6x32xf32, #tpu.memory_space<vmem>>, vector<6x32xf32>
    tpu.vector_store %arg6[%c0_152, %c0_153], %378 {strides = array<i32>} : memref<6x32xf32, #tpu.memory_space<vmem>>, vector<6x32xf32>,
    %393 = vector.extract_strided_slice %385 {offsets = [5, 0], sizes = [1, 32], strides = [1, 1]} : vector<6x32xf32> to vector<1x32xf32>
    %394 = vector.extract_strided_slice %385 {offsets = [0, 0], sizes = [5, 32], strides = [1, 1]} : vector<6x32xf32> to vector<5x32xf32>
    %395 = tpu.concatenate %393, %394 in 0 : vector<1x32xf32>, vector<5x32xf32> -> vector<6x32xf32>
    %c0_154 = arith.constant 0 : index
    %c0_155 = arith.constant 0 : index
    %396 = vector.load %arg7[%c0_154, %c0_155] : memref<6x32xf32, #tpu.memory_space<vmem>>, vector<6x32xf32>
    tpu.vector_store %arg7[%c0_154, %c0_155], %395 {strides = array<i32>} : memref<6x32xf32, #tpu.memory_space<vmem>>, vector<6x32xf32>,
    %c8_i32 = arith.constant 8 : i32
    return
  }
  func.func @transform_0(%arg0: i32, %arg1: i32) -> (i32, i32, i32, i32) {
    %c0_i32 = arith.constant 0 : i32
    %c0_i32_0 = arith.constant 0 : i32
    %c0_i32_1 = arith.constant 0 : i32
    return %arg1, %arg0, %c0_i32, %c0_i32_0 : i32, i32, i32, i32
  }
  func.func @transform_1(%arg0: i32, %arg1: i32) -> (i32, i32) {
    %c0_i32 = arith.constant 0 : i32
    %c0_i32_0 = arith.constant 0 : i32
    %c0_i32_1 = arith.constant 0 : i32
    return %c0_i32, %c0_i32_0 : i32, i32
  }
  func.func @transform_2(%arg0: i32, %arg1: i32) -> (i32, i32) {
    %c0_i32 = arith.constant 0 : i32
    %c0_i32_0 = arith.constant 0 : i32
    %c0_i32_1 = arith.constant 0 : i32
    return %c0_i32, %c0_i32_0 : i32, i32
  }
  func.func @transform_3(%arg0: i32, %arg1: i32) -> (i32, i32, i32, i32) {
    %c0_i32 = arith.constant 0 : i32
    %c0_i32_0 = arith.constant 0 : i32
    %c0_i32_1 = arith.constant 0 : i32
    return %arg1, %arg0, %c0_i32, %c0_i32_0 : i32, i32, i32, i32
  }
}

</mosaic_0001>

<llo_original>
// kernel: tpu_custom_call.1
$region0: #{tpu_custom_call.1}
  #allocation0 [shape = 'u32[]', space=smem, size = 0x4, offset = 0x4, fixed_abs, tag = 'smem constant byte address 0x4 - core index']
  #allocation1 [shape = 'u32[144,128]{1,0:T(1,128)}', space=vmem, size = 0x12000, scoped, tag = 'internal scratch']
  #allocation2 [shape = 'f32[6,32]{1,0:T(8,128)}', space=vmem, size = 0x1000, scoped, tag = 'scratch operand']
  #allocation3 [shape = 'f32[6,32]{1,0:T(8,128)}', space=vmem, size = 0x1000, scoped, tag = 'scratch operand']
  %s0 = inlined_call_operand.vmem [shape: f32[16,2,6,192], index: 0, kind: input, shape index: {}]
  %s1 = inlined_call_operand.vmem [shape: f32[32,192], index: 1, kind: input, shape index: {}]
  %s2 = inlined_call_operand.vmem [shape: f32[32,192], index: 2, kind: input, shape index: {}]
  %s3 = inlined_call_operand.vmem [shape: f32[16,2,6,64], index: 3, kind: output, shape index: {}]
  %s4 = sld [smem:[#allocation0]]
  $region106: #{tpu_custom_call.1} parent=0
    _
  %s6 = ssub.s32 1, %s4
  %s7 = scalar_select 0, %s6, %s4
  $region1: #{tpu_custom_call.1} parent=0
    #allocation4 [shape = 'u8[131072]{0}', space=vmem, size = 0x20000, scoped, tag = 'input window, operand 0']
    #allocation5 [shape = 'u8[65536]{0}', space=vmem, size = 0x10000, scoped, tag = 'output window, operand 0']
    loop: start=0, step=1, limit=6
    $region2: #{tpu_custom_call.1} parent=1 // loop_pre_header
      _
    $region3: #{tpu_custom_call.1} parent=1 // loop_header
      %s9 = sphi 0, %s13
      %p10 = scmp.ge.s32.totalorder %s9, 6
      %s16 = sphi 0, %s28
      %s17 = sphi 0, %s24
      %s18 = sphi 0, %s16
      %s19 = sphi 0, %s17
      %s20 = sphi 0, %s18
      %s21 = sphi 0, %s19
      %s33 = sphi 0, %s35
      %s36 = sphi 0, %s33
      %s37 = sphi 0, %s36
      %s53 = sphi 0, %s37
      %s57 = sphi 0, %s57
      %s59 = sphi 0, %s57
      %s60 = sphi 0, %s59
      %s74 = sphi 0, %s60
      %s78 = sphi 0, %s78
      %s80 = sphi 0, %s78
      %s81 = sphi 0, %s80
      %s95 = sphi 0, %s81
      %s103 = sphi 0, %s105
      %s106 = sphi 0, %s103
      %s107 = sphi 0, %s106
      %s123 = sphi 0, %s107
    $region4: #{tpu_custom_call.1} parent=1 // loop_header_branch
      %12 = sbr.rel (%p10) target = $region8
    $region5: #{tpu_custom_call.1} parent=1 // loop_body
      %s14 = ssub.s32 %s9, 1
      %s15 = ssub.s32 %s9, 2
      %s22 = sadd.s32 1, %s17
      %p23 = scmp.ge.s32.totalorder %s22, 2
      %s24 = scalar_select %p23, 0, %s22
      %s25 = sadd.s32 1, %s16
      %s26 = scalar_select %p23, %s25, %s16
      %p27 = scmp.ge.s32.totalorder %s26, 2
      %s28 = scalar_select %p27, 0, %s26
      %s29 = ssub.s32 %s17, %s24
      %s30 = ssub.s32 %s16, %s28
      %s31 = sor.u32 %s29, %s30
      %p32 = scmp.eq.s32.totalorder %s31, 0
      %s34 = sadd.s32 %s33, 1
      %s35 = scalar_select %p32, %s33, %s34
      %p38 = pneg %p32
      %p39 = scmp.eq.s32.totalorder %s9, 3
      %p40 = por %p38, %p39
      %p41 = scmp.ne.s32.totalorder %s33, %s36
      %p42 = scmp.eq.s32.totalorder %s9, 0
      %p43 = por %p41, %p42
      %p44 = scmp.ne.s32.totalorder %s33, %s36
      %p45 = scmp.eq.s32.totalorder %s14, 3
      %p46 = por %p44, %p45
      %p47 = scmp.ne.s32.totalorder %s36, %s37
      %p48 = scmp.eq.s32.totalorder %s14, 0
      %p49 = por %p47, %p48
      %p50 = scmp.ne.s32.totalorder %s36, %s37
      %p51 = scmp.eq.s32.totalorder %s15, 3
      %p52 = por %p50, %p51
      %p54 = scmp.ne.s32.totalorder %s37, %s53
      %p55 = scmp.eq.s32.totalorder %s15, 0
      %p56 = por %p54, %p55
      %s58 = sadd.s32 %s57, 1
      %p61 = scmp.eq.s32.totalorder %s9, 3
      %p62 = scmp.ne.s32.totalorder %s57, %s59
      %p63 = scmp.eq.s32.totalorder %s9, 0
      %p64 = por %p62, %p63
      %p65 = scmp.ne.s32.totalorder %s57, %s59
      %p66 = scmp.eq.s32.totalorder %s14, 3
      %p67 = por %p65, %p66
      %p68 = scmp.ne.s32.totalorder %s59, %s60
      %p69 = scmp.eq.s32.totalorder %s14, 0
      %p70 = por %p68, %p69
      %p71 = scmp.ne.s32.totalorder %s59, %s60
      %p72 = scmp.eq.s32.totalorder %s15, 3
      %p73 = por %p71, %p72
      %p75 = scmp.ne.s32.totalorder %s60, %s74
      %p76 = scmp.eq.s32.totalorder %s15, 0
      %p77 = por %p75, %p76
      %s79 = sadd.s32 %s78, 1
      %p82 = scmp.eq.s32.totalorder %s9, 3
      %p83 = scmp.ne.s32.totalorder %s78, %s80
      %p84 = scmp.eq.s32.totalorder %s9, 0
      %p85 = por %p83, %p84
      %p86 = scmp.ne.s32.totalorder %s78, %s80
      %p87 = scmp.eq.s32.totalorder %s14, 3
      %p88 = por %p86, %p87
      %p89 = scmp.ne.s32.totalorder %s80, %s81
      %p90 = scmp.eq.s32.totalorder %s14, 0
      %p91 = por %p89, %p90
      %p92 = scmp.ne.s32.totalorder %s80, %s81
      %p93 = scmp.eq.s32.totalorder %s15, 3
      %p94 = por %p92, %p93
      %p96 = scmp.ne.s32.totalorder %s81, %s95
      %p97 = scmp.eq.s32.totalorder %s15, 0
      %p98 = por %p96, %p97
      %s99 = ssub.s32 %s17, %s24
      %s100 = ssub.s32 %s16, %s28
      %s101 = sor.u32 %s99, %s100
      %p102 = scmp.eq.s32.totalorder %s101, 0
      %s104 = sadd.s32 %s103, 1
      %s105 = scalar_select %p102, %s103, %s104
      %p108 = pneg %p102
      %p109 = scmp.eq.s32.totalorder %s9, 3
      %p110 = por %p108, %p109
      %p111 = scmp.ne.s32.totalorder %s103, %s106
      %p112 = scmp.eq.s32.totalorder %s9, 0
      %p113 = por %p111, %p112
      %p114 = scmp.ne.s32.totalorder %s103, %s106
      %p115 = scmp.eq.s32.totalorder %s14, 3
      %p116 = por %p114, %p115
      %p117 = scmp.ne.s32.totalorder %s106, %s107
      %p118 = scmp.eq.s32.totalorder %s14, 0
      %p119 = por %p117, %p118
      %p120 = scmp.ne.s32.totalorder %s106, %s107
      %p121 = scmp.eq.s32.totalorder %s15, 3
      %p122 = por %p120, %p121
      %p124 = scmp.ne.s32.totalorder %s107, %s123
      %p125 = scmp.eq.s32.totalorder %s15, 0
      %p126 = por %p124, %p125
      %p127 = scmp.le.s32.totalorder 1, %s9
      %p128 = scmp.lt.s32.totalorder %s9, 5
      %p129 = pnand %p127, %p128
      %p130 = pneg %p129
      // Predicated region
      $region9: #{tpu_custom_call.1} parent=5 // pred_check
        _
      $region10: #{tpu_custom_call.1} parent=5 // pred_check_branch
        %132 = sbr.rel (%p129) target = $region12
      $region11: #{tpu_custom_call.1} parent=5 // pred_region
        %s133 = ssub.s32 %s9, 1
        // Predicated region
        $region13: #{tpu_custom_call.1} parent=11 // pred_check
          %p134 = pneg %p70
        $region14: #{tpu_custom_call.1} parent=11 // pred_check_branch
          %136 = sbr.rel (%p134) target = $region16
        $region15: #{tpu_custom_call.1} parent=11 // pred_region
          _
        $region16: #{tpu_custom_call.1} parent=11 // pred_fallthru
          _
        // Predicated region
        $region17: #{tpu_custom_call.1} parent=11 // pred_check
          %p137 = pneg %p91
        $region18: #{tpu_custom_call.1} parent=11 // pred_check_branch
          %139 = sbr.rel (%p137) target = $region20
        $region19: #{tpu_custom_call.1} parent=11 // pred_region
          _
        $region20: #{tpu_custom_call.1} parent=11 // pred_fallthru
          _
      $region12: #{tpu_custom_call.1} parent=5 // pred_fallthru
        _
      %p140 = scmp.lt.s32.totalorder %s9, 4
      // Predicated region
      $region21: #{tpu_custom_call.1} parent=5 // pred_check
        %p141 = pneg %p140
      $region22: #{tpu_custom_call.1} parent=5 // pred_check_branch
        %143 = sbr.rel (%p141) target = $region24
      $region23: #{tpu_custom_call.1} parent=5 // pred_region
        // Predicated region
        $region25: #{tpu_custom_call.1} parent=23 // pred_check
          %p144 = pneg %p43
        $region26: #{tpu_custom_call.1} parent=23 // pred_check_branch
          %146 = sbr.rel (%p144) target = $region28
        $region27: #{tpu_custom_call.1} parent=23 // pred_region
          %s147 = sand.u32 %s33, 1
          %s148 = sand.u32 %s33, 1
          %s149 = smul.addr %s148, 128
          %s150 = scalar_lea.vmem [#allocation4], %s149
          %s151 = smul.u32 8, %s17
          %s152 = smul.addr %s16, 2
          %s153 = smul.addr %s151, 4
          %s154 = sadd.s32 %s152, %s153
          %s155 = smul.addr %s154, 8
          %s156 = scalar_lea.vmem %s0, %s155
          // Predicated region
          $region29: #{tpu_custom_call.1} parent=27 // pred_check
            _
          $region30: #{tpu_custom_call.1} parent=27 // pred_check_branch
            %158 = sbr.rel (0) target = $region32
          $region31: #{tpu_custom_call.1} parent=27 // pred_region
            // Predicated region
            $region33: #{tpu_custom_call.1} parent=31 // pred_check
              _
            $region34: #{tpu_custom_call.1} parent=31 // pred_check_branch
              %160 = sbr.rel (0) target = $region36
            $region35: #{tpu_custom_call.1} parent=31 // pred_region
              loop: start=0, step=1, limit=1
              $region37: #{tpu_custom_call.1} parent=35 // loop_pre_header
                _
              $region38: #{tpu_custom_call.1} parent=35 // loop_header
                %s162 = sphi 0, %s166
                %p163 = scmp.ge.s32.totalorder %s162, 1
                %s167 = sphi %s156, %s156
                %s168 = sphi %s150, %s150
              $region39: #{tpu_custom_call.1} parent=35 // loop_header_branch
                %165 = sbr.rel (%p163) target = $region43
              $region40: #{tpu_custom_call.1} parent=35 // loop_body
                %v169 = vld [vmem:[%s167] sm:$0xff]
                %170 = vst [vmem:[%s168] sm:$0xff] %v169
                %v171 = vld [vmem:[%s167 + $0x8] sm:$0xff]
                %172 = vst [vmem:[%s168 + $0x8] sm:$0xff] %v171
                %v173 = vld [vmem:[%s167 + $0x20] sm:$0xff]
                %174 = vst [vmem:[%s168 + $0x10] sm:$0xff] %v173
                %v175 = vld [vmem:[%s167 + $0x28] sm:$0xff]
                %176 = vst [vmem:[%s168 + $0x18] sm:$0xff] %v175
                %v177 = vld [vmem:[%s167 + $0x40] sm:$0xff]
                %178 = vst [vmem:[%s168 + $0x20] sm:$0xff] %v177
                %v179 = vld [vmem:[%s167 + $0x48] sm:$0xff]
                %180 = vst [vmem:[%s168 + $0x28] sm:$0xff] %v179
                %v181 = vld [vmem:[%s167 + $0x60] sm:$0xff]
                %182 = vst [vmem:[%s168 + $0x30] sm:$0xff] %v181
                %v183 = vld [vmem:[%s167 + $0x68] sm:$0xff]
                %184 = vst [vmem:[%s168 + $0x38] sm:$0xff] %v183
                %v185 = vld [vmem:[%s167 + $0x80] sm:$0xff]
                %186 = vst [vmem:[%s168 + $0x40] sm:$0xff] %v185
                %v187 = vld [vmem:[%s167 + $0x88] sm:$0xff]
                %188 = vst [vmem:[%s168 + $0x48] sm:$0xff] %v187
                %v189 = vld [vmem:[%s167 + $0xa0] sm:$0xff]
                %190 = vst [vmem:[%s168 + $0x50] sm:$0xff] %v189
                %v191 = vld [vmem:[%s167 + $0xa8] sm:$0xff]
                %192 = vst [vmem:[%s168 + $0x58] sm:$0xff] %v191
                %v193 = vld [vmem:[%s167 + $0xc0] sm:$0xff]
                %194 = vst [vmem:[%s168 + $0x60] sm:$0xff] %v193
                %v195 = vld [vmem:[%s167 + $0xc8] sm:$0xff]
                %196 = vst [vmem:[%s168 + $0x68] sm:$0xff] %v195
                %v197 = vld [vmem:[%s167 + $0xe0] sm:$0xff]
                %198 = vst [vmem:[%s168 + $0x70] sm:$0xff] %v197
                %v199 = vld [vmem:[%s167 + $0xe8] sm:$0xff]
                %200 = vst [vmem:[%s168 + $0x78] sm:$0xff] %v199
              $region41: #{tpu_custom_call.1} parent=35 // loop_footer
                %s166 = sadd.s32 1, %s162
              $region42: #{tpu_custom_call.1} parent=35 // loop_footer_branch
                %161 = sbr.rel target = $region38
              $region43: #{tpu_custom_call.1} parent=35 // loop_exit
                _
            $region36: #{tpu_custom_call.1} parent=31 // pred_fallthru
              _
            // Predicated region
            $region44: #{tpu_custom_call.1} parent=31 // pred_check
              _
            $region45: #{tpu_custom_call.1} parent=31 // pred_check_branch
              %202 = sbr.rel target = $region47
            $region46: #{tpu_custom_call.1} parent=31 // pred_region
              _
            $region47: #{tpu_custom_call.1} parent=31 // pred_fallthru
              _
          $region32: #{tpu_custom_call.1} parent=27 // pred_fallthru
            _
          %203 = vnop
        $region28: #{tpu_custom_call.1} parent=23 // pred_fallthru
          _
      $region24: #{tpu_custom_call.1} parent=5 // pred_fallthru
        _
      %p204 = scmp.le.s32.totalorder 1, %s9
      %p205 = scmp.lt.s32.totalorder %s9, 5
      %p206 = pnand %p204, %p205
      %p207 = pneg %p206
      // Predicated region
      $region48: #{tpu_custom_call.1} parent=5 // pred_check
        _
      $region49: #{tpu_custom_call.1} parent=5 // pred_check_branch
        %209 = sbr.rel (%p206) target = $region51
      $region50: #{tpu_custom_call.1} parent=5 // pred_region
        %s210 = ssub.s32 %s9, 1
        %s211 = sand.u32 %s36, 1
        %s212 = sand.u32 %s36, 1
        %s213 = smul.addr %s212, 128
        %s214 = scalar_lea.vmem [#allocation4], %s213
        // Predicated region
        $region52: #{tpu_custom_call.1} parent=50 // pred_check
          %p215 = pneg %p49
        $region53: #{tpu_custom_call.1} parent=50 // pred_check_branch
          %217 = sbr.rel (%p215) target = $region55
        $region54: #{tpu_custom_call.1} parent=50 // pred_region
          _
        $region55: #{tpu_custom_call.1} parent=50 // pred_fallthru
          _
        %s218 = sand.u32 %s36, 1
        %s219 = sand.u32 %s36, 1
        %s220 = smul.addr %s219, 128
        %s221 = scalar_lea.vmem [#allocation4], %s220
        %p222 = pneg %p49
        %p223 = pneg %p46
        %p224 = pneg %p70
        %p225 = pneg %p67
        %p226 = pneg %p91
        %p227 = pneg %p88
        %p228 = pneg %p119
        %p229 = pneg %p116
        %s230 = sand.u32 %s106, 1
        %s231 = sand.u32 %s106, 1
        %s232 = smul.addr %s231, 64
        %s233 = scalar_lea.vmem [#allocation5], %s232
        %s234 = smul.u32 8, %s19
        %s235 = smul.u32 8, %s19
        %p236 = scmp.eq.s32.totalorder %s19, 0
        // Predicated region
        $region56: #{tpu_custom_call.1} parent=50 // pred_check
          %p237 = pneg %p236
        $region57: #{tpu_custom_call.1} parent=50 // pred_check_branch
          %239 = sbr.rel (%p237) target = $region59
        $region58: #{tpu_custom_call.1} parent=50 // pred_region
          %vm240 = vcmask 259072
          %241 = vst.msk [vmem:[#allocation2] sm:$0x3f] %vm240, 0.0
          %242 = vst.msk [vmem:[#allocation3] sm:$0x3f] %vm240, 0.0
        $region59: #{tpu_custom_call.1} parent=50 // pred_fallthru
          _
        %v243 = vld [vmem:[%s1] sm:$0xff]
        %v244 = vld [vmem:[%s1 + $0x8] sm:$0xff]
        %v245 = vld [vmem:[%s1 + $0x10] sm:$0xff]
        %v246 = vld [vmem:[%s1 + $0x18] sm:$0xff]
        %v247 = vld [vmem:[%s1 + $0x20] sm:$0xff]
        %v248 = vld [vmem:[%s1 + $0x28] sm:$0xff]
        %v249 = vld [vmem:[%s1 + $0x30] sm:$0xff]
        %v250 = vld [vmem:[%s1 + $0x38] sm:$0xff]
        %v251 = vld [vmem:[%s2] sm:$0xff]
        %v252 = vld [vmem:[%s2 + $0x8] sm:$0xff]
        %v253 = vld [vmem:[%s2 + $0x10] sm:$0xff]
        %v254 = vld [vmem:[%s2 + $0x18] sm:$0xff]
        %v255 = vld [vmem:[%s2 + $0x20] sm:$0xff]
        %v256 = vld [vmem:[%s2 + $0x28] sm:$0xff]
        %v257 = vld [vmem:[%s2 + $0x30] sm:$0xff]
        %v258 = vld [vmem:[%s2 + $0x38] sm:$0xff]
        %v259 = vld [vmem:[#allocation2] sm:$0x3f]
        %v260 = vld [vmem:[#allocation3] sm:$0x3f]
        %v261 = vld [vmem:[%s214] sm:$0x3f]
        %v262 = vld [vmem:[%s214 + $0x8] sm:$0x3f]
        %vm263 = vcmask 261120
        %v265 = vsel %vm263, %v259, 0
        %267 = vmatprep.subr.mxu0 %v244
        %268 = vmatpush1.msra.mxu0 %v243
        %269 = vmatprep.subr.mxu0 %v246
        %270 = vmatpush1.msra.mxu0 %v245
        %271 = vmatprep.subr.mxu0 %v248
        %272 = vmatpush1.msra.mxu0 %v247
        %273 = vmatprep.subr.mxu0 %v250
        %274 = vmatpush1.msra.mxu0 %v249
        %275 = vmatprep.subr.mxu0 0.0
        %276 = vmatpush1.msra.mxu0 0.0
        %277 = vmatprep.subr.mxu0 0.0
        %278 = vmatpush1.msra.mxu0 0.0
        %279 = vmatprep.subr.mxu0 0.0
        %280 = vmatpush1.msra.mxu0 0.0
        %281 = vmatprep.subr.mxu0 0.0
        %282 = vmatpush1.msra.mxu0 0.0
        %283 = vmatprep.subr.mxu0 0.0
        %284 = vmatpush1.msra.mxu0 0.0
        %285 = vmatprep.subr.mxu0 0.0
        %286 = vmatpush1.msra.mxu0 0.0
        %287 = vmatprep.subr.mxu0 0.0
        %288 = vmatpush1.msra.mxu0 0.0
        %289 = vmatprep.subr.mxu0 0.0
        %290 = vmatpush1.msra.mxu0 0.0
        %291 = vmatprep.subr.mxu0 0.0
        %292 = vmatpush1.msra.mxu0 0.0
        %293 = vmatprep.subr.mxu0 0.0
        %294 = vmatpush1.msra.mxu0 0.0
        %295 = vmatprep.subr.mxu0 0.0
        %296 = vmatpush1.msra.mxu0 0.0
        %297 = vmatprep.subr.mxu0 0.0
        %298 = vmatpush1.msra.mxu0 0.0
        %299 = vmatprep.subr.mxu0 0.0
        %300 = vmatpush1.msra.mxu0 0.0
        %301 = vmatprep.subr.mxu0 0.0
        %302 = vmatpush1.msra.mxu0 0.0
        %303 = vmatprep.subr.mxu0 0.0
        %304 = vmatpush1.msra.mxu0 0.0
        %305 = vmatprep.subr.mxu0 0.0
        %306 = vmatpush1.msra.mxu0 0.0
        %307 = vmatprep.subr.mxu0 0.0
        %308 = vmatpush1.msra.mxu0 0.0
        %309 = vmatprep.subr.mxu0 0.0
        %310 = vmatpush1.msra.mxu0 0.0
        %311 = vmatprep.subr.mxu0 0.0
        %312 = vmatpush1.msra.mxu0 0.0
        %313 = vmatprep.subr.mxu0 0.0
        %314 = vmatpush1.msra.mxu0 0.0
        %315 = vmatprep.subr.mxu0 0.0
        %316 = vmatpush1.msra.mxu0 0.0
        %317 = vmatprep.subr.mxu0 0.0
        %318 = vmatpush1.msra.mxu0 0.0
        %319 = vmatprep.subr.mxu0 0.0
        %320 = vmatpush1.msra.mxu0 0.0
        %321 = vmatprep.subr.mxu0 0.0
        %322 = vmatpush1.msra.mxu0 0.0
        %323 = vmatprep.subr.mxu0 0.0
        %324 = vmatpush1.msra.mxu0 0.0
        %325 = vmatprep.subr.mxu0 0.0
        %326 = vmatpush1.msra.mxu0 0.0
        %327 = vmatprep.subr.mxu0 0.0
        %328 = vmatpush1.msra.mxu0 0.0
        %329 = vmatprep.subr.mxu0 0.0
        %330 = vmatpush1.msra.mxu0 0.0
        %331 = vmatprep.mubr.f32.mxu0 0.0
        %332 = vmatmul.mubr.f32.gmra.mrb[0].mxu0 %v265
        %v333 = vpop.f32.mrb[0].mxu0
        %v334 = vadd.f32 0.0, %v333
        %v335 = vpop.f32.mrb[0].mxu0
        %v336 = vadd.f32 0.0, %v335
        %337 = vdwg.mxu0
        %v338 = vadd.f32 %v261, %v334
        %v339 = vadd.f32 %v262, %v336
        %v341 = vsel %vm263, %v260, 0
        %343 = vmatprep.subr.mxu0 %v252
        %344 = vmatpush1.msra.mxu0 %v251
        %345 = vmatprep.subr.mxu0 %v254
        %346 = vmatpush1.msra.mxu0 %v253
        %347 = vmatprep.subr.mxu0 %v256
        %348 = vmatpush1.msra.mxu0 %v255
        %349 = vmatprep.subr.mxu0 %v258
        %350 = vmatpush1.msra.mxu0 %v257
        %351 = vmatprep.subr.mxu0 0.0
        %352 = vmatpush1.msra.mxu0 0.0
        %353 = vmatprep.subr.mxu0 0.0
        %354 = vmatpush1.msra.mxu0 0.0
        %355 = vmatprep.subr.mxu0 0.0
        %356 = vmatpush1.msra.mxu0 0.0
        %357 = vmatprep.subr.mxu0 0.0
        %358 = vmatpush1.msra.mxu0 0.0
        %359 = vmatprep.subr.mxu0 0.0
        %360 = vmatpush1.msra.mxu0 0.0
        %361 = vmatprep.subr.mxu0 0.0
        %362 = vmatpush1.msra.mxu0 0.0
        %363 = vmatprep.subr.mxu0 0.0
        %364 = vmatpush1.msra.mxu0 0.0
        %365 = vmatprep.subr.mxu0 0.0
        %366 = vmatpush1.msra.mxu0 0.0
        %367 = vmatprep.subr.mxu0 0.0
        %368 = vmatpush1.msra.mxu0 0.0
        %369 = vmatprep.subr.mxu0 0.0
        %370 = vmatpush1.msra.mxu0 0.0
        %371 = vmatprep.subr.mxu0 0.0
        %372 = vmatpush1.msra.mxu0 0.0
        %373 = vmatprep.subr.mxu0 0.0
        %374 = vmatpush1.msra.mxu0 0.0
        %375 = vmatprep.subr.mxu0 0.0
        %376 = vmatpush1.msra.mxu0 0.0
        %377 = vmatprep.subr.mxu0 0.0
        %378 = vmatpush1.msra.mxu0 0.0
        %379 = vmatprep.subr.mxu0 0.0
        %380 = vmatpush1.msra.mxu0 0.0
        %381 = vmatprep.subr.mxu0 0.0
        %382 = vmatpush1.msra.mxu0 0.0
        %383 = vmatprep.subr.mxu0 0.0
        %384 = vmatpush1.msra.mxu0 0.0
        %385 = vmatprep.subr.mxu0 0.0
        %386 = vmatpush1.msra.mxu0 0.0
        %387 = vmatprep.subr.mxu0 0.0
        %388 = vmatpush1.msra.mxu0 0.0
        %389 = vmatprep.subr.mxu0 0.0
        %390 = vmatpush1.msra.mxu0 0.0
        %391 = vmatprep.subr.mxu0 0.0
        %392 = vmatpush1.msra.mxu0 0.0
        %393 = vmatprep.subr.mxu0 0.0
        %394 = vmatpush1.msra.mxu0 0.0
        %395 = vmatprep.subr.mxu0 0.0
        %396 = vmatpush1.msra.mxu0 0.0
        %397 = vmatprep.subr.mxu0 0.0
        %398 = vmatpush1.msra.mxu0 0.0
        %399 = vmatprep.subr.mxu0 0.0
        %400 = vmatpush1.msra.mxu0 0.0
        %401 = vmatprep.subr.mxu0 0.0
        %402 = vmatpush1.msra.mxu0 0.0
        %403 = vmatprep.subr.mxu0 0.0
        %404 = vmatpush1.msra.mxu0 0.0
        %405 = vmatprep.subr.mxu0 0.0
        %406 = vmatpush1.msra.mxu0 0.0
        %407 = vmatprep.mubr.f32.mxu0 0.0
        %408 = vmatmul.mubr.f32.gmra.mrb[0].mxu0 %v341
        %v409 = vpop.f32.mrb[0].mxu0
        %v410 = vadd.f32 0.0, %v409
        %v411 = vpop.f32.mrb[0].mxu0
        %v412 = vadd.f32 0.0, %v411
        %413 = vdwg.mxu0
        %v414 = vadd.f32 %v338, %v410
        %v415 = vadd.f32 %v339, %v412
        %v416 = vxor.u32 %v414, 2147483648
        %v417 = vmul.f32 %v416, 1.442695
        %v418 = vpow.pop %v417
        %v419 = vadd.f32 %v418, 1.0
        %v420 = vrcp.pop %v419
        %v421 = vmul.f32 1.0, %v420
        %v422 = vtanh.pop %v415
        %v423 = vsub.f32 1.0, %v421
        %v424 = vmul.f32 %v423, %v259
        %v425 = vmul.f32 %v421, %v422
        %v426 = vadd.f32 %v424, %v425
        %v427 = vtanh.pop %v426
        %429 = vrot.lane.b32.xlu0 %v421, 96
        %v430 = vpop.permute.xlu0 %429
        %v432 = vmul.f32 %v427, %v430
        %433 = vrot.lane.b32.xlu0 %v260, 64
        %v434 = vpop.permute.xlu0 %433
        %v436 = vmul.f32 %v423, %v434
        %438 = vrot.lane.b32.xlu0 %v422, 32
        %v439 = vpop.permute.xlu0 %438
        %v441 = vmul.f32 %v421, %v439
        %v442 = vadd.f32 %v436, %v441
        %v443 = vtanh.pop %v442
        %v444 = vmul.f32 %v443, %v430
        %446 = vrot.lane.b32.xlu0 %v444, 96
        %v447 = vpop.permute.xlu0 %446
        %v449 = vsel %vm263, %v432, %v447
        %vm450 = vcmask 521216
        %451 = vst.msk [vmem:[%s233] sm:$0x3f] %vm450, %v449
        %vm452 = vcmask 259072
        %453 = vst.msk [vmem:[#allocation2] sm:$0x3f] %vm452, %v432
        %v454 = vrot.slane %v444, 5
        %v456 = vrot.slane %v444, 7
        %vm458 = vcmask 1040384
        %v459 = vsel %vm458, %v454, %v456
        %461 = vrot.lane.b32.xlu0 %v459, 64
        %v462 = vpop.permute.xlu0 %461
        %464 = vst.msk [vmem:[#allocation3] sm:$0x3f] %vm452, %v462
        %v465 = vld [vmem:[#allocation2] sm:$0x3f]
        %v466 = vld [vmem:[#allocation3] sm:$0x3f]
        %s467 = scalar_lea.vmem %s214, 16 [#allocation4]
        %v468 = vld [vmem:[%s467] sm:$0x3f]
        %v469 = vld [vmem:[%s467 + $0x8] sm:$0x3f]
        %v471 = vsel %vm263, %v465, 0
        %473 = vmatprep.subr.mxu0 %v244
        %474 = vmatpush1.msra.mxu0 %v243
        %475 = vmatprep.subr.mxu0 %v246
        %476 = vmatpush1.msra.mxu0 %v245
        %477 = vmatprep.subr.mxu0 %v248
        %478 = vmatpush1.msra.mxu0 %v247
        %479 = vmatprep.subr.mxu0 %v250
        %480 = vmatpush1.msra.mxu0 %v249
        %481 = vmatprep.subr.mxu0 0.0
        %482 = vmatpush1.msra.mxu0 0.0
        %483 = vmatprep.subr.mxu0 0.0
        %484 = vmatpush1.msra.mxu0 0.0
        %485 = vmatprep.subr.mxu0 0.0
        %486 = vmatpush1.msra.mxu0 0.0
        %487 = vmatprep.subr.mxu0 0.0
        %488 = vmatpush1.msra.mxu0 0.0
        %489 = vmatprep.subr.mxu0 0.0
        %490 = vmatpush1.msra.mxu0 0.0
        %491 = vmatprep.subr.mxu0 0.0
        %492 = vmatpush1.msra.mxu0 0.0
        %493 = vmatprep.subr.mxu0 0.0
        %494 = vmatpush1.msra.mxu0 0.0
        %495 = vmatprep.subr.mxu0 0.0
        %496 = vmatpush1.msra.mxu0 0.0
        %497 = vmatprep.subr.mxu0 0.0
        %498 = vmatpush1.msra.mxu0 0.0
        %499 = vmatprep.subr.mxu0 0.0
        %500 = vmatpush1.msra.mxu0 0.0
        %501 = vmatprep.subr.mxu0 0.0
        %502 = vmatpush1.msra.mxu0 0.0
        %503 = vmatprep.subr.mxu0 0.0
        %504 = vmatpush1.msra.mxu0 0.0
        %505 = vmatprep.subr.mxu0 0.0
        %506 = vmatpush1.msra.mxu0 0.0
        %507 = vmatprep.subr.mxu0 0.0
        %508 = vmatpush1.msra.mxu0 0.0
        %509 = vmatprep.subr.mxu0 0.0
        %510 = vmatpush1.msra.mxu0 0.0
        %511 = vmatprep.subr.mxu0 0.0
        %512 = vmatpush1.msra.mxu0 0.0
        %513 = vmatprep.subr.mxu0 0.0
        %514 = vmatpush1.msra.mxu0 0.0
        %515 = vmatprep.subr.mxu0 0.0
        %516 = vmatpush1.msra.mxu0 0.0
        %517 = vmatprep.subr.mxu0 0.0
        %518 = vmatpush1.msra.mxu0 0.0
        %519 = vmatprep.subr.mxu0 0.0
        %520 = vmatpush1.msra.mxu0 0.0
        %521 = vmatprep.subr.mxu0 0.0
        %522 = vmatpush1.msra.mxu0 0.0
        %523 = vmatprep.subr.mxu0 0.0
        %524 = vmatpush1.msra.mxu0 0.0
        %525 = vmatprep.subr.mxu0 0.0
        %526 = vmatpush1.msra.mxu0 0.0
        %527 = vmatprep.subr.mxu0 0.0
        %528 = vmatpush1.msra.mxu0 0.0
        %529 = vmatprep.subr.mxu0 0.0
        %530 = vmatpush1.msra.mxu0 0.0
        %531 = vmatprep.subr.mxu0 0.0
        %532 = vmatpush1.msra.mxu0 0.0
        %533 = vmatprep.subr.mxu0 0.0
        %534 = vmatpush1.msra.mxu0 0.0
        %535 = vmatprep.subr.mxu0 0.0
        %536 = vmatpush1.msra.mxu0 0.0
        %537 = vmatprep.mubr.f32.mxu0 0.0
        %538 = vmatmul.mubr.f32.gmra.mrb[0].mxu0 %v471
        %v539 = vpop.f32.mrb[0].mxu0
        %v540 = vadd.f32 0.0, %v539
        %v541 = vpop.f32.mrb[0].mxu0
        %v542 = vadd.f32 0.0, %v541
        %543 = vdwg.mxu0
        %v544 = vadd.f32 %v468, %v540
        %v545 = vadd.f32 %v469, %v542
        %v547 = vsel %vm263, %v466, 0
        %549 = vmatprep.subr.mxu0 %v252
        %550 = vmatpush1.msra.mxu0 %v251
        %551 = vmatprep.subr.mxu0 %v254
        %552 = vmatpush1.msra.mxu0 %v253
        %553 = vmatprep.subr.mxu0 %v256
        %554 = vmatpush1.msra.mxu0 %v255
        %555 = vmatprep.subr.mxu0 %v258
        %556 = vmatpush1.msra.mxu0 %v257
        %557 = vmatprep.subr.mxu0 0.0
        %558 = vmatpush1.msra.mxu0 0.0
        %559 = vmatprep.subr.mxu0 0.0
        %560 = vmatpush1.msra.mxu0 0.0
        %561 = vmatprep.subr.mxu0 0.0
        %562 = vmatpush1.msra.mxu0 0.0
        %563 = vmatprep.subr.mxu0 0.0
        %564 = vmatpush1.msra.mxu0 0.0
        %565 = vmatprep.subr.mxu0 0.0
        %566 = vmatpush1.msra.mxu0 0.0
        %567 = vmatprep.subr.mxu0 0.0
        %568 = vmatpush1.msra.mxu0 0.0
        %569 = vmatprep.subr.mxu0 0.0
        %570 = vmatpush1.msra.mxu0 0.0
        %571 = vmatprep.subr.mxu0 0.0
        %572 = vmatpush1.msra.mxu0 0.0
        %573 = vmatprep.subr.mxu0 0.0
        %574 = vmatpush1.msra.mxu0 0.0
        %575 = vmatprep.subr.mxu0 0.0
        %576 = vmatpush1.msra.mxu0 0.0
        %577 = vmatprep.subr.mxu0 0.0
        %578 = vmatpush1.msra.mxu0 0.0
        %579 = vmatprep.subr.mxu0 0.0
        %580 = vmatpush1.msra.mxu0 0.0
        %581 = vmatprep.subr.mxu0 0.0
        %582 = vmatpush1.msra.mxu0 0.0
        %583 = vmatprep.subr.mxu0 0.0
        %584 = vmatpush1.msra.mxu0 0.0
        %585 = vmatprep.subr.mxu0 0.0
        %586 = vmatpush1.msra.mxu0 0.0
        %587 = vmatprep.subr.mxu0 0.0
        %588 = vmatpush1.msra.mxu0 0.0
        %589 = vmatprep.subr.mxu0 0.0
        %590 = vmatpush1.msra.mxu0 0.0
        %591 = vmatprep.subr.mxu0 0.0
        %592 = vmatpush1.msra.mxu0 0.0
        %593 = vmatprep.subr.mxu0 0.0
        %594 = vmatpush1.msra.mxu0 0.0
        %595 = vmatprep.subr.mxu0 0.0
        %596 = vmatpush1.msra.mxu0 0.0
        %597 = vmatprep.subr.mxu0 0.0
        %598 = vmatpush1.msra.mxu0 0.0
        %599 = vmatprep.subr.mxu0 0.0
        %600 = vmatpush1.msra.mxu0 0.0
        %601 = vmatprep.subr.mxu0 0.0
        %602 = vmatpush1.msra.mxu0 0.0
        %603 = vmatprep.subr.mxu0 0.0
        %604 = vmatpush1.msra.mxu0 0.0
        %605 = vmatprep.subr.mxu0 0.0
        %606 = vmatpush1.msra.mxu0 0.0
        %607 = vmatprep.subr.mxu0 0.0
        %608 = vmatpush1.msra.mxu0 0.0
        %609 = vmatprep.subr.mxu0 0.0
        %610 = vmatpush1.msra.mxu0 0.0
        %611 = vmatprep.subr.mxu0 0.0
        %612 = vmatpush1.msra.mxu0 0.0
        %613 = vmatprep.mubr.f32.mxu0 0.0
        %614 = vmatmul.mubr.f32.gmra.mrb[0].mxu0 %v547
        %v615 = vpop.f32.mrb[0].mxu0
        %v616 = vadd.f32 0.0, %v615
        %v617 = vpop.f32.mrb[0].mxu0
        %v618 = vadd.f32 0.0, %v617
        %619 = vdwg.mxu0
        %v620 = vadd.f32 %v544, %v616
        %v621 = vadd.f32 %v545, %v618
        %v622 = vxor.u32 %v620, 2147483648
        %v623 = vmul.f32 %v622, 1.442695
        %v624 = vpow.pop %v623
        %v625 = vadd.f32 %v624, 1.0
        %v626 = vrcp.pop %v625
        %v627 = vmul.f32 1.0, %v626
        %v628 = vtanh.pop %v621
        %v629 = vsub.f32 1.0, %v627
        %v630 = vmul.f32 %v629, %v465
        %v631 = vmul.f32 %v627, %v628
        %v632 = vadd.f32 %v630, %v631
        %v633 = vtanh.pop %v632
        %635 = vrot.lane.b32.xlu0 %v627, 96
        %v636 = vpop.permute.xlu0 %635
        %v638 = vmul.f32 %v633, %v636
        %639 = vrot.lane.b32.xlu0 %v466, 64
        %v640 = vpop.permute.xlu0 %639
        %v642 = vmul.f32 %v629, %v640
        %644 = vrot.lane.b32.xlu0 %v628, 32
        %v645 = vpop.permute.xlu0 %644
        %v647 = vmul.f32 %v627, %v645
        %v648 = vadd.f32 %v642, %v647
        %v649 = vtanh.pop %v648
        %v650 = vmul.f32 %v649, %v636
        %652 = vrot.lane.b32.xlu0 %v650, 96
        %v653 = vpop.permute.xlu0 %652
        %v655 = vsel %vm263, %v638, %v653
        %s656 = scalar_lea.vmem %s233, 8 [#allocation5]
        %657 = vst.msk [vmem:[%s656] sm:$0x3f] %vm450, %v655
        %658 = vst.msk [vmem:[#allocation2] sm:$0x3f] %vm452, %v638
        %v659 = vrot.slane %v650, 5
        %v661 = vrot.slane %v650, 7
        %v663 = vsel %vm458, %v659, %v661
        %665 = vrot.lane.b32.xlu0 %v663, 64
        %v666 = vpop.permute.xlu0 %665
        %668 = vst.msk [vmem:[#allocation3] sm:$0x3f] %vm452, %v666
        %v669 = vld [vmem:[#allocation2] sm:$0x3f]
        %v670 = vld [vmem:[#allocation3] sm:$0x3f]
        %s671 = scalar_lea.vmem %s214, 32 [#allocation4]
        %v672 = vld [vmem:[%s671] sm:$0x3f]
        %v673 = vld [vmem:[%s671 + $0x8] sm:$0x3f]
        %v675 = vsel %vm263, %v669, 0
        %677 = vmatprep.subr.mxu0 %v244
        %678 = vmatpush1.msra.mxu0 %v243
        %679 = vmatprep.subr.mxu0 %v246
        %680 = vmatpush1.msra.mxu0 %v245
        %681 = vmatprep.subr.mxu0 %v248
        %682 = vmatpush1.msra.mxu0 %v247
        %683 = vmatprep.subr.mxu0 %v250
        %684 = vmatpush1.msra.mxu0 %v249
        %685 = vmatprep.subr.mxu0 0.0
        %686 = vmatpush1.msra.mxu0 0.0
        %687 = vmatprep.subr.mxu0 0.0
        %688 = vmatpush1.msra.mxu0 0.0
        %689 = vmatprep.subr.mxu0 0.0
        %690 = vmatpush1.msra.mxu0 0.0
        %691 = vmatprep.subr.mxu0 0.0
        %692 = vmatpush1.msra.mxu0 0.0
        %693 = vmatprep.subr.mxu0 0.0
        %694 = vmatpush1.msra.mxu0 0.0
        %695 = vmatprep.subr.mxu0 0.0
        %696 = vmatpush1.msra.mxu0 0.0
        %697 = vmatprep.subr.mxu0 0.0
        %698 = vmatpush1.msra.mxu0 0.0
        %699 = vmatprep.subr.mxu0 0.0
        %700 = vmatpush1.msra.mxu0 0.0
        %701 = vmatprep.subr.mxu0 0.0
        %702 = vmatpush1.msra.mxu0 0.0
        %703 = vmatprep.subr.mxu0 0.0
        %704 = vmatpush1.msra.mxu0 0.0
        %705 = vmatprep.subr.mxu0 0.0
        %706 = vmatpush1.msra.mxu0 0.0
        %707 = vmatprep.subr.mxu0 0.0
        %708 = vmatpush1.msra.mxu0 0.0
        %709 = vmatprep.subr.mxu0 0.0
        %710 = vmatpush1.msra.mxu0 0.0
        %711 = vmatprep.subr.mxu0 0.0
        %712 = vmatpush1.msra.mxu0 0.0
        %713 = vmatprep.subr.mxu0 0.0
        %714 = vmatpush1.msra.mxu0 0.0
        %715 = vmatprep.subr.mxu0 0.0
        %716 = vmatpush1.msra.mxu0 0.0
        %717 = vmatprep.subr.mxu0 0.0
        %718 = vmatpush1.msra.mxu0 0.0
        %719 = vmatprep.subr.mxu0 0.0
        %720 = vmatpush1.msra.mxu0 0.0
        %721 = vmatprep.subr.mxu0 0.0
        %722 = vmatpush1.msra.mxu0 0.0
        %723 = vmatprep.subr.mxu0 0.0
        %724 = vmatpush1.msra.mxu0 0.0
        %725 = vmatprep.subr.mxu0 0.0
        %726 = vmatpush1.msra.mxu0 0.0
        %727 = vmatprep.subr.mxu0 0.0
        %728 = vmatpush1.msra.mxu0 0.0
        %729 = vmatprep.subr.mxu0 0.0
        %730 = vmatpush1.msra.mxu0 0.0
        %731 = vmatprep.subr.mxu0 0.0
        %732 = vmatpush1.msra.mxu0 0.0
        %733 = vmatprep.subr.mxu0 0.0
        %734 = vmatpush1.msra.mxu0 0.0
        %735 = vmatprep.subr.mxu0 0.0
        %736 = vmatpush1.msra.mxu0 0.0
        %737 = vmatprep.subr.mxu0 0.0
        %738 = vmatpush1.msra.mxu0 0.0
        %739 = vmatprep.subr.mxu0 0.0
        %740 = vmatpush1.msra.mxu0 0.0
        %741 = vmatprep.mubr.f32.mxu0 0.0
        %742 = vmatmul.mubr.f32.gmra.mrb[0].mxu0 %v675
        %v743 = vpop.f32.mrb[0].mxu0
        %v744 = vadd.f32 0.0, %v743
        %v745 = vpop.f32.mrb[0].mxu0
        %v746 = vadd.f32 0.0, %v745
        %747 = vdwg.mxu0
        %v748 = vadd.f32 %v672, %v744
        %v749 = vadd.f32 %v673, %v746
        %v751 = vsel %vm263, %v670, 0
        %753 = vmatprep.subr.mxu0 %v252
        %754 = vmatpush1.msra.mxu0 %v251
        %755 = vmatprep.subr.mxu0 %v254
        %756 = vmatpush1.msra.mxu0 %v253
        %757 = vmatprep.subr.mxu0 %v256
        %758 = vmatpush1.msra.mxu0 %v255
        %759 = vmatprep.subr.mxu0 %v258
        %760 = vmatpush1.msra.mxu0 %v257
        %761 = vmatprep.subr.mxu0 0.0
        %762 = vmatpush1.msra.mxu0 0.0
        %763 = vmatprep.subr.mxu0 0.0
        %764 = vmatpush1.msra.mxu0 0.0
        %765 = vmatprep.subr.mxu0 0.0
        %766 = vmatpush1.msra.mxu0 0.0
        %767 = vmatprep.subr.mxu0 0.0
        %768 = vmatpush1.msra.mxu0 0.0
        %769 = vmatprep.subr.mxu0 0.0
        %770 = vmatpush1.msra.mxu0 0.0
        %771 = vmatprep.subr.mxu0 0.0
        %772 = vmatpush1.msra.mxu0 0.0
        %773 = vmatprep.subr.mxu0 0.0
        %774 = vmatpush1.msra.mxu0 0.0
        %775 = vmatprep.subr.mxu0 0.0
        %776 = vmatpush1.msra.mxu0 0.0
        %777 = vmatprep.subr.mxu0 0.0
        %778 = vmatpush1.msra.mxu0 0.0
        %779 = vmatprep.subr.mxu0 0.0
        %780 = vmatpush1.msra.mxu0 0.0
        %781 = vmatprep.subr.mxu0 0.0
        %782 = vmatpush1.msra.mxu0 0.0
        %783 = vmatprep.subr.mxu0 0.0
        %784 = vmatpush1.msra.mxu0 0.0
        %785 = vmatprep.subr.mxu0 0.0
        %786 = vmatpush1.msra.mxu0 0.0
        %787 = vmatprep.subr.mxu0 0.0
        %788 = vmatpush1.msra.mxu0 0.0
        %789 = vmatprep.subr.mxu0 0.0
        %790 = vmatpush1.msra.mxu0 0.0
        %791 = vmatprep.subr.mxu0 0.0
        %792 = vmatpush1.msra.mxu0 0.0
        %793 = vmatprep.subr.mxu0 0.0
        %794 = vmatpush1.msra.mxu0 0.0
        %795 = vmatprep.subr.mxu0 0.0
        %796 = vmatpush1.msra.mxu0 0.0
        %797 = vmatprep.subr.mxu0 0.0
        %798 = vmatpush1.msra.mxu0 0.0
        %799 = vmatprep.subr.mxu0 0.0
        %800 = vmatpush1.msra.mxu0 0.0
        %801 = vmatprep.subr.mxu0 0.0
        %802 = vmatpush1.msra.mxu0 0.0
        %803 = vmatprep.subr.mxu0 0.0
        %804 = vmatpush1.msra.mxu0 0.0
        %805 = vmatprep.subr.mxu0 0.0
        %806 = vmatpush1.msra.mxu0 0.0
        %807 = vmatprep.subr.mxu0 0.0
        %808 = vmatpush1.msra.mxu0 0.0
        %809 = vmatprep.subr.mxu0 0.0
        %810 = vmatpush1.msra.mxu0 0.0
        %811 = vmatprep.subr.mxu0 0.0
        %812 = vmatpush1.msra.mxu0 0.0
        %813 = vmatprep.subr.mxu0 0.0
        %814 = vmatpush1.msra.mxu0 0.0
        %815 = vmatprep.subr.mxu0 0.0
        %816 = vmatpush1.msra.mxu0 0.0
        %817 = vmatprep.mubr.f32.mxu0 0.0
        %818 = vmatmul.mubr.f32.gmra.mrb[0].mxu0 %v751
        %v819 = vpop.f32.mrb[0].mxu0
        %v820 = vadd.f32 0.0, %v819
        %v821 = vpop.f32.mrb[0].mxu0
        %v822 = vadd.f32 0.0, %v821
        %823 = vdwg.mxu0
        %v824 = vadd.f32 %v748, %v820
        %v825 = vadd.f32 %v749, %v822
        %v826 = vxor.u32 %v824, 2147483648
        %v827 = vmul.f32 %v826, 1.442695
        %v828 = vpow.pop %v827
        %v829 = vadd.f32 %v828, 1.0
        %v830 = vrcp.pop %v829
        %v831 = vmul.f32 1.0, %v830
        %v832 = vtanh.pop %v825
        %v833 = vsub.f32 1.0, %v831
        %v834 = vmul.f32 %v833, %v669
        %v835 = vmul.f32 %v831, %v832
        %v836 = vadd.f32 %v834, %v835
        %v837 = vtanh.pop %v836
        %839 = vrot.lane.b32.xlu0 %v831, 96
        %v840 = vpop.permute.xlu0 %839
        %v842 = vmul.f32 %v837, %v840
        %843 = vrot.lane.b32.xlu0 %v670, 64
        %v844 = vpop.permute.xlu0 %843
        %v846 = vmul.f32 %v833, %v844
        %848 = vrot.lane.b32.xlu0 %v832, 32
        %v849 = vpop.permute.xlu0 %848
        %v851 = vmul.f32 %v831, %v849
        %v852 = vadd.f32 %v846, %v851
        %v853 = vtanh.pop %v852
        %v854 = vmul.f32 %v853, %v840
        %856 = vrot.lane.b32.xlu0 %v854, 96
        %v857 = vpop.permute.xlu0 %856
        %v859 = vsel %vm263, %v842, %v857
        %s860 = scalar_lea.vmem %s233, 16 [#allocation5]
        %861 = vst.msk [vmem:[%s860] sm:$0x3f] %vm450, %v859
        %862 = vst.msk [vmem:[#allocation2] sm:$0x3f] %vm452, %v842
        %v863 = vrot.slane %v854, 5
        %v865 = vrot.slane %v854, 7
        %v867 = vsel %vm458, %v863, %v865
        %869 = vrot.lane.b32.xlu0 %v867, 64
        %v870 = vpop.permute.xlu0 %869
        %872 = vst.msk [vmem:[#allocation3] sm:$0x3f] %vm452, %v870
        %v873 = vld [vmem:[#allocation2] sm:$0x3f]
        %v874 = vld [vmem:[#allocation3] sm:$0x3f]
        %s875 = scalar_lea.vmem %s214, 48 [#allocation4]
        %v876 = vld [vmem:[%s875] sm:$0x3f]
        %v877 = vld [vmem:[%s875 + $0x8] sm:$0x3f]
        %v879 = vsel %vm263, %v873, 0
        %881 = vmatprep.subr.mxu0 %v244
        %882 = vmatpush1.msra.mxu0 %v243
        %883 = vmatprep.subr.mxu0 %v246
        %884 = vmatpush1.msra.mxu0 %v245
        %885 = vmatprep.subr.mxu0 %v248
        %886 = vmatpush1.msra.mxu0 %v247
        %887 = vmatprep.subr.mxu0 %v250
        %888 = vmatpush1.msra.mxu0 %v249
        %889 = vmatprep.subr.mxu0 0.0
        %890 = vmatpush1.msra.mxu0 0.0
        %891 = vmatprep.subr.mxu0 0.0
        %892 = vmatpush1.msra.mxu0 0.0
        %893 = vmatprep.subr.mxu0 0.0
        %894 = vmatpush1.msra.mxu0 0.0
        %895 = vmatprep.subr.mxu0 0.0
        %896 = vmatpush1.msra.mxu0 0.0
        %897 = vmatprep.subr.mxu0 0.0
        %898 = vmatpush1.msra.mxu0 0.0
        %899 = vmatprep.subr.mxu0 0.0
        %900 = vmatpush1.msra.mxu0 0.0
        %901 = vmatprep.subr.mxu0 0.0
        %902 = vmatpush1.msra.mxu0 0.0
        %903 = vmatprep.subr.mxu0 0.0
        %904 = vmatpush1.msra.mxu0 0.0
        %905 = vmatprep.subr.mxu0 0.0
        %906 = vmatpush1.msra.mxu0 0.0
        %907 = vmatprep.subr.mxu0 0.0
        %908 = vmatpush1.msra.mxu0 0.0
        %909 = vmatprep.subr.mxu0 0.0
        %910 = vmatpush1.msra.mxu0 0.0
        %911 = vmatprep.subr.mxu0 0.0
        %912 = vmatpush1.msra.mxu0 0.0
        %913 = vmatprep.subr.mxu0 0.0
        %914 = vmatpush1.msra.mxu0 0.0
        %915 = vmatprep.subr.mxu0 0.0
        %916 = vmatpush1.msra.mxu0 0.0
        %917 = vmatprep.subr.mxu0 0.0
        %918 = vmatpush1.msra.mxu0 0.0
        %919 = vmatprep.subr.mxu0 0.0
        %920 = vmatpush1.msra.mxu0 0.0
        %921 = vmatprep.subr.mxu0 0.0
        %922 = vmatpush1.msra.mxu0 0.0
        %923 = vmatprep.subr.mxu0 0.0
        %924 = vmatpush1.msra.mxu0 0.0
        %925 = vmatprep.subr.mxu0 0.0
        %926 = vmatpush1.msra.mxu0 0.0
        %927 = vmatprep.subr.mxu0 0.0
        %928 = vmatpush1.msra.mxu0 0.0
        %929 = vmatprep.subr.mxu0 0.0
        %930 = vmatpush1.msra.mxu0 0.0
        %931 = vmatprep.subr.mxu0 0.0
        %932 = vmatpush1.msra.mxu0 0.0
        %933 = vmatprep.subr.mxu0 0.0
        %934 = vmatpush1.msra.mxu0 0.0
        %935 = vmatprep.subr.mxu0 0.0
        %936 = vmatpush1.msra.mxu0 0.0
        %937 = vmatprep.subr.mxu0 0.0
        %938 = vmatpush1.msra.mxu0 0.0
        %939 = vmatprep.subr.mxu0 0.0
        %940 = vmatpush1.msra.mxu0 0.0
        %941 = vmatprep.subr.mxu0 0.0
        %942 = vmatpush1.msra.mxu0 0.0
        %943 = vmatprep.subr.mxu0 0.0
        %944 = vmatpush1.msra.mxu0 0.0
        %945 = vmatprep.mubr.f32.mxu0 0.0
        %946 = vmatmul.mubr.f32.gmra.mrb[0].mxu0 %v879
        %v947 = vpop.f32.mrb[0].mxu0
        %v948 = vadd.f32 0.0, %v947
        %v949 = vpop.f32.mrb[0].mxu0
        %v950 = vadd.f32 0.0, %v949
        %951 = vdwg.mxu0
        %v952 = vadd.f32 %v876, %v948
        %v953 = vadd.f32 %v877, %v950
        %v955 = vsel %vm263, %v874, 0
        %957 = vmatprep.subr.mxu0 %v252
        %958 = vmatpush1.msra.mxu0 %v251
        %959 = vmatprep.subr.mxu0 %v254
        %960 = vmatpush1.msra.mxu0 %v253
        %961 = vmatprep.subr.mxu0 %v256
        %962 = vmatpush1.msra.mxu0 %v255
        %963 = vmatprep.subr.mxu0 %v258
        %964 = vmatpush1.msra.mxu0 %v257
        %965 = vmatprep.subr.mxu0 0.0
        %966 = vmatpush1.msra.mxu0 0.0
        %967 = vmatprep.subr.mxu0 0.0
        %968 = vmatpush1.msra.mxu0 0.0
        %969 = vmatprep.subr.mxu0 0.0
        %970 = vmatpush1.msra.mxu0 0.0
        %971 = vmatprep.subr.mxu0 0.0
        %972 = vmatpush1.msra.mxu0 0.0
        %973 = vmatprep.subr.mxu0 0.0
        %974 = vmatpush1.msra.mxu0 0.0
        %975 = vmatprep.subr.mxu0 0.0
        %976 = vmatpush1.msra.mxu0 0.0
        %977 = vmatprep.subr.mxu0 0.0
        %978 = vmatpush1.msra.mxu0 0.0
        %979 = vmatprep.subr.mxu0 0.0
        %980 = vmatpush1.msra.mxu0 0.0
        %981 = vmatprep.subr.mxu0 0.0
        %982 = vmatpush1.msra.mxu0 0.0
        %983 = vmatprep.subr.mxu0 0.0
        %984 = vmatpush1.msra.mxu0 0.0
        %985 = vmatprep.subr.mxu0 0.0
        %986 = vmatpush1.msra.mxu0 0.0
        %987 = vmatprep.subr.mxu0 0.0
        %988 = vmatpush1.msra.mxu0 0.0
        %989 = vmatprep.subr.mxu0 0.0
        %990 = vmatpush1.msra.mxu0 0.0
        %991 = vmatprep.subr.mxu0 0.0
        %992 = vmatpush1.msra.mxu0 0.0
        %993 = vmatprep.subr.mxu0 0.0
        %994 = vmatpush1.msra.mxu0 0.0
        %995 = vmatprep.subr.mxu0 0.0
        %996 = vmatpush1.msra.mxu0 0.0
        %997 = vmatprep.subr.mxu0 0.0
        %998 = vmatpush1.msra.mxu0 0.0
        %999 = vmatprep.subr.mxu0 0.0
        %1000 = vmatpush1.msra.mxu0 0.0
        %1001 = vmatprep.subr.mxu0 0.0
        %1002 = vmatpush1.msra.mxu0 0.0
        %1003 = vmatprep.subr.mxu0 0.0
        %1004 = vmatpush1.msra.mxu0 0.0
        %1005 = vmatprep.subr.mxu0 0.0
        %1006 = vmatpush1.msra.mxu0 0.0
        %1007 = vmatprep.subr.mxu0 0.0
        %1008 = vmatpush1.msra.mxu0 0.0
        %1009 = vmatprep.subr.mxu0 0.0
        %1010 = vmatpush1.msra.mxu0 0.0
        %1011 = vmatprep.subr.mxu0 0.0
        %1012 = vmatpush1.msra.mxu0 0.0
        %1013 = vmatprep.subr.mxu0 0.0
        %1014 = vmatpush1.msra.mxu0 0.0
        %1015 = vmatprep.subr.mxu0 0.0
        %1016 = vmatpush1.msra.mxu0 0.0
        %1017 = vmatprep.subr.mxu0 0.0
        %1018 = vmatpush1.msra.mxu0 0.0
        %1019 = vmatprep.subr.mxu0 0.0
        %1020 = vmatpush1.msra.mxu0 0.0
        %1021 = vmatprep.mubr.f32.mxu0 0.0
        %1022 = vmatmul.mubr.f32.gmra.mrb[0].mxu0 %v955
        %v1023 = vpop.f32.mrb[0].mxu0
        %v1024 = vadd.f32 0.0, %v1023
        %v1025 = vpop.f32.mrb[0].mxu0
        %v1026 = vadd.f32 0.0, %v1025
        %1027 = vdwg.mxu0
        %v1028 = vadd.f32 %v952, %v1024
        %v1029 = vadd.f32 %v953, %v1026
        %v1030 = vxor.u32 %v1028, 2147483648
        %v1031 = vmul.f32 %v1030, 1.442695
        %v1032 = vpow.pop %v1031
        %v1033 = vadd.f32 %v1032, 1.0
        %v1034 = vrcp.pop %v1033
        %v1035 = vmul.f32 1.0, %v1034
        %v1036 = vtanh.pop %v1029
        %v1037 = vsub.f32 1.0, %v1035
        %v1038 = vmul.f32 %v1037, %v873
        %v1039 = vmul.f32 %v1035, %v1036
        %v1040 = vadd.f32 %v1038, %v1039
        %v1041 = vtanh.pop %v1040
        %1043 = vrot.lane.b32.xlu0 %v1035, 96
        %v1044 = vpop.permute.xlu0 %1043
        %v1046 = vmul.f32 %v1041, %v1044
        %1047 = vrot.lane.b32.xlu0 %v874, 64
        %v1048 = vpop.permute.xlu0 %1047
        %v1050 = vmul.f32 %v1037, %v1048
        %1052 = vrot.lane.b32.xlu0 %v1036, 32
        %v1053 = vpop.permute.xlu0 %1052
        %v1055 = vmul.f32 %v1035, %v1053
        %v1056 = vadd.f32 %v1050, %v1055
        %v1057 = vtanh.pop %v1056
        %v1058 = vmul.f32 %v1057, %v1044
        %1060 = vrot.lane.b32.xlu0 %v1058, 96
        %v1061 = vpop.permute.xlu0 %1060
        %v1063 = vsel %vm263, %v1046, %v1061
        %s1064 = scalar_lea.vmem %s233, 24 [#allocation5]
        %1065 = vst.msk [vmem:[%s1064] sm:$0x3f] %vm450, %v1063
        %1066 = vst.msk [vmem:[#allocation2] sm:$0x3f] %vm452, %v1046
        %v1067 = vrot.slane %v1058, 5
        %v1069 = vrot.slane %v1058, 7
        %v1071 = vsel %vm458, %v1067, %v1069
        %1073 = vrot.lane.b32.xlu0 %v1071, 64
        %v1074 = vpop.permute.xlu0 %1073
        %1076 = vst.msk [vmem:[#allocation3] sm:$0x3f] %vm452, %v1074
        %v1077 = vld [vmem:[#allocation2] sm:$0x3f]
        %v1078 = vld [vmem:[#allocation3] sm:$0x3f]
        %s1079 = scalar_lea.vmem %s214, 64 [#allocation4]
        %v1080 = vld [vmem:[%s1079] sm:$0x3f]
        %v1081 = vld [vmem:[%s1079 + $0x8] sm:$0x3f]
        %v1083 = vsel %vm263, %v1077, 0
        %1085 = vmatprep.subr.mxu0 %v244
        %1086 = vmatpush1.msra.mxu0 %v243
        %1087 = vmatprep.subr.mxu0 %v246
        %1088 = vmatpush1.msra.mxu0 %v245
        %1089 = vmatprep.subr.mxu0 %v248
        %1090 = vmatpush1.msra.mxu0 %v247
        %1091 = vmatprep.subr.mxu0 %v250
        %1092 = vmatpush1.msra.mxu0 %v249
        %1093 = vmatprep.subr.mxu0 0.0
        %1094 = vmatpush1.msra.mxu0 0.0
        %1095 = vmatprep.subr.mxu0 0.0
        %1096 = vmatpush1.msra.mxu0 0.0
        %1097 = vmatprep.subr.mxu0 0.0
        %1098 = vmatpush1.msra.mxu0 0.0
        %1099 = vmatprep.subr.mxu0 0.0
        %1100 = vmatpush1.msra.mxu0 0.0
        %1101 = vmatprep.subr.mxu0 0.0
        %1102 = vmatpush1.msra.mxu0 0.0
        %1103 = vmatprep.subr.mxu0 0.0
        %1104 = vmatpush1.msra.mxu0 0.0
        %1105 = vmatprep.subr.mxu0 0.0
        %1106 = vmatpush1.msra.mxu0 0.0
        %1107 = vmatprep.subr.mxu0 0.0
        %1108 = vmatpush1.msra.mxu0 0.0
        %1109 = vmatprep.subr.mxu0 0.0
        %1110 = vmatpush1.msra.mxu0 0.0
        %1111 = vmatprep.subr.mxu0 0.0
        %1112 = vmatpush1.msra.mxu0 0.0
        %1113 = vmatprep.subr.mxu0 0.0
        %1114 = vmatpush1.msra.mxu0 0.0
        %1115 = vmatprep.subr.mxu0 0.0
        %1116 = vmatpush1.msra.mxu0 0.0
        %1117 = vmatprep.subr.mxu0 0.0
        %1118 = vmatpush1.msra.mxu0 0.0
        %1119 = vmatprep.subr.mxu0 0.0
        %1120 = vmatpush1.msra.mxu0 0.0
        %1121 = vmatprep.subr.mxu0 0.0
        %1122 = vmatpush1.msra.mxu0 0.0
        %1123 = vmatprep.subr.mxu0 0.0
        %1124 = vmatpush1.msra.mxu0 0.0
        %1125 = vmatprep.subr.mxu0 0.0
        %1126 = vmatpush1.msra.mxu0 0.0
        %1127 = vmatprep.subr.mxu0 0.0
        %1128 = vmatpush1.msra.mxu0 0.0
        %1129 = vmatprep.subr.mxu0 0.0
        %1130 = vmatpush1.msra.mxu0 0.0
        %1131 = vmatprep.subr.mxu0 0.0
        %1132 = vmatpush1.msra.mxu0 0.0
        %1133 = vmatprep.subr.mxu0 0.0
        %1134 = vmatpush1.msra.mxu0 0.0
        %1135 = vmatprep.subr.mxu0 0.0
        %1136 = vmatpush1.msra.mxu0 0.0
        %1137 = vmatprep.subr.mxu0 0.0
        %1138 = vmatpush1.msra.mxu0 0.0
        %1139 = vmatprep.subr.mxu0 0.0
        %1140 = vmatpush1.msra.mxu0 0.0
        %1141 = vmatprep.subr.mxu0 0.0
        %1142 = vmatpush1.msra.mxu0 0.0
        %1143 = vmatprep.subr.mxu0 0.0
        %1144 = vmatpush1.msra.mxu0 0.0
        %1145 = vmatprep.subr.mxu0 0.0
        %1146 = vmatpush1.msra.mxu0 0.0
        %1147 = vmatprep.subr.mxu0 0.0
        %1148 = vmatpush1.msra.mxu0 0.0
        %1149 = vmatprep.mubr.f32.mxu0 0.0
        %1150 = vmatmul.mubr.f32.gmra.mrb[0].mxu0 %v1083
        %v1151 = vpop.f32.mrb[0].mxu0
        %v1152 = vadd.f32 0.0, %v1151
        %v1153 = vpop.f32.mrb[0].mxu0
        %v1154 = vadd.f32 0.0, %v1153
        %1155 = vdwg.mxu0
        %v1156 = vadd.f32 %v1080, %v1152
        %v1157 = vadd.f32 %v1081, %v1154
        %v1159 = vsel %vm263, %v1078, 0
        %1161 = vmatprep.subr.mxu0 %v252
        %1162 = vmatpush1.msra.mxu0 %v251
        %1163 = vmatprep.subr.mxu0 %v254
        %1164 = vmatpush1.msra.mxu0 %v253
        %1165 = vmatprep.subr.mxu0 %v256
        %1166 = vmatpush1.msra.mxu0 %v255
        %1167 = vmatprep.subr.mxu0 %v258
        %1168 = vmatpush1.msra.mxu0 %v257
        %1169 = vmatprep.subr.mxu0 0.0
        %1170 = vmatpush1.msra.mxu0 0.0
        %1171 = vmatprep.subr.mxu0 0.0
        %1172 = vmatpush1.msra.mxu0 0.0
        %1173 = vmatprep.subr.mxu0 0.0
        %1174 = vmatpush1.msra.mxu0 0.0
        %1175 = vmatprep.subr.mxu0 0.0
        %1176 = vmatpush1.msra.mxu0 0.0
        %1177 = vmatprep.subr.mxu0 0.0
        %1178 = vmatpush1.msra.mxu0 0.0
        %1179 = vmatprep.subr.mxu0 0.0
        %1180 = vmatpush1.msra.mxu0 0.0
        %1181 = vmatprep.subr.mxu0 0.0
        %1182 = vmatpush1.msra.mxu0 0.0
        %1183 = vmatprep.subr.mxu0 0.0
        %1184 = vmatpush1.msra.mxu0 0.0
        %1185 = vmatprep.subr.mxu0 0.0
        %1186 = vmatpush1.msra.mxu0 0.0
        %1187 = vmatprep.subr.mxu0 0.0
        %1188 = vmatpush1.msra.mxu0 0.0
        %1189 = vmatprep.subr.mxu0 0.0
        %1190 = vmatpush1.msra.mxu0 0.0
        %1191 = vmatprep.subr.mxu0 0.0
        %1192 = vmatpush1.msra.mxu0 0.0
        %1193 = vmatprep.subr.mxu0 0.0
        %1194 = vmatpush1.msra.mxu0 0.0
        %1195 = vmatprep.subr.mxu0 0.0
        %1196 = vmatpush1.msra.mxu0 0.0
        %1197 = vmatprep.subr.mxu0 0.0
        %1198 = vmatpush1.msra.mxu0 0.0
        %1199 = vmatprep.subr.mxu0 0.0
        %1200 = vmatpush1.msra.mxu0 0.0
        %1201 = vmatprep.subr.mxu0 0.0
        %1202 = vmatpush1.msra.mxu0 0.0
        %1203 = vmatprep.subr.mxu0 0.0
        %1204 = vmatpush1.msra.mxu0 0.0
        %1205 = vmatprep.subr.mxu0 0.0
        %1206 = vmatpush1.msra.mxu0 0.0
        %1207 = vmatprep.subr.mxu0 0.0
        %1208 = vmatpush1.msra.mxu0 0.0
        %1209 = vmatprep.subr.mxu0 0.0
        %1210 = vmatpush1.msra.mxu0 0.0
        %1211 = vmatprep.subr.mxu0 0.0
        %1212 = vmatpush1.msra.mxu0 0.0
        %1213 = vmatprep.subr.mxu0 0.0
        %1214 = vmatpush1.msra.mxu0 0.0
        %1215 = vmatprep.subr.mxu0 0.0
        %1216 = vmatpush1.msra.mxu0 0.0
        %1217 = vmatprep.subr.mxu0 0.0
        %1218 = vmatpush1.msra.mxu0 0.0
        %1219 = vmatprep.subr.mxu0 0.0
        %1220 = vmatpush1.msra.mxu0 0.0
        %1221 = vmatprep.subr.mxu0 0.0
        %1222 = vmatpush1.msra.mxu0 0.0
        %1223 = vmatprep.subr.mxu0 0.0
        %1224 = vmatpush1.msra.mxu0 0.0
        %1225 = vmatprep.mubr.f32.mxu0 0.0
        %1226 = vmatmul.mubr.f32.gmra.mrb[0].mxu0 %v1159
        %v1227 = vpop.f32.mrb[0].mxu0
        %v1228 = vadd.f32 0.0, %v1227
        %v1229 = vpop.f32.mrb[0].mxu0
        %v1230 = vadd.f32 0.0, %v1229
        %1231 = vdwg.mxu0
        %v1232 = vadd.f32 %v1156, %v1228
        %v1233 = vadd.f32 %v1157, %v1230
        %v1234 = vxor.u32 %v1232, 2147483648
        %v1235 = vmul.f32 %v1234, 1.442695
        %v1236 = vpow.pop %v1235
        %v1237 = vadd.f32 %v1236, 1.0
        %v1238 = vrcp.pop %v1237
        %v1239 = vmul.f32 1.0, %v1238
        %v1240 = vtanh.pop %v1233
        %v1241 = vsub.f32 1.0, %v1239
        %v1242 = vmul.f32 %v1241, %v1077
        %v1243 = vmul.f32 %v1239, %v1240
        %v1244 = vadd.f32 %v1242, %v1243
        %v1245 = vtanh.pop %v1244
        %1247 = vrot.lane.b32.xlu0 %v1239, 96
        %v1248 = vpop.permute.xlu0 %1247
        %v1250 = vmul.f32 %v1245, %v1248
        %1251 = vrot.lane.b32.xlu0 %v1078, 64
        %v1252 = vpop.permute.xlu0 %1251
        %v1254 = vmul.f32 %v1241, %v1252
        %1256 = vrot.lane.b32.xlu0 %v1240, 32
        %v1257 = vpop.permute.xlu0 %1256
        %v1259 = vmul.f32 %v1239, %v1257
        %v1260 = vadd.f32 %v1254, %v1259
        %v1261 = vtanh.pop %v1260
        %v1262 = vmul.f32 %v1261, %v1248
        %1264 = vrot.lane.b32.xlu0 %v1262, 96
        %v1265 = vpop.permute.xlu0 %1264
        %v1267 = vsel %vm263, %v1250, %v1265
        %s1268 = scalar_lea.vmem %s233, 32 [#allocation5]
        %1269 = vst.msk [vmem:[%s1268] sm:$0x3f] %vm450, %v1267
        %1270 = vst.msk [vmem:[#allocation2] sm:$0x3f] %vm452, %v1250
        %v1271 = vrot.slane %v1262, 5
        %v1273 = vrot.slane %v1262, 7
        %v1275 = vsel %vm458, %v1271, %v1273
        %1277 = vrot.lane.b32.xlu0 %v1275, 64
        %v1278 = vpop.permute.xlu0 %1277
        %1280 = vst.msk [vmem:[#allocation3] sm:$0x3f] %vm452, %v1278
        %v1281 = vld [vmem:[#allocation2] sm:$0x3f]
        %v1282 = vld [vmem:[#allocation3] sm:$0x3f]
        %s1283 = scalar_lea.vmem %s214, 80 [#allocation4]
        %v1284 = vld [vmem:[%s1283] sm:$0x3f]
        %v1285 = vld [vmem:[%s1283 + $0x8] sm:$0x3f]
        %v1287 = vsel %vm263, %v1281, 0
        %1289 = vmatprep.subr.mxu0 %v244
        %1290 = vmatpush1.msra.mxu0 %v243
        %1291 = vmatprep.subr.mxu0 %v246
        %1292 = vmatpush1.msra.mxu0 %v245
        %1293 = vmatprep.subr.mxu0 %v248
        %1294 = vmatpush1.msra.mxu0 %v247
        %1295 = vmatprep.subr.mxu0 %v250
        %1296 = vmatpush1.msra.mxu0 %v249
        %1297 = vmatprep.subr.mxu0 0.0
        %1298 = vmatpush1.msra.mxu0 0.0
        %1299 = vmatprep.subr.mxu0 0.0
        %1300 = vmatpush1.msra.mxu0 0.0
        %1301 = vmatprep.subr.mxu0 0.0
        %1302 = vmatpush1.msra.mxu0 0.0
        %1303 = vmatprep.subr.mxu0 0.0
        %1304 = vmatpush1.msra.mxu0 0.0
        %1305 = vmatprep.subr.mxu0 0.0
        %1306 = vmatpush1.msra.mxu0 0.0
        %1307 = vmatprep.subr.mxu0 0.0
        %1308 = vmatpush1.msra.mxu0 0.0
        %1309 = vmatprep.subr.mxu0 0.0
        %1310 = vmatpush1.msra.mxu0 0.0
        %1311 = vmatprep.subr.mxu0 0.0
        %1312 = vmatpush1.msra.mxu0 0.0
        %1313 = vmatprep.subr.mxu0 0.0
        %1314 = vmatpush1.msra.mxu0 0.0
        %1315 = vmatprep.subr.mxu0 0.0
        %1316 = vmatpush1.msra.mxu0 0.0
        %1317 = vmatprep.subr.mxu0 0.0
        %1318 = vmatpush1.msra.mxu0 0.0
        %1319 = vmatprep.subr.mxu0 0.0
        %1320 = vmatpush1.msra.mxu0 0.0
        %1321 = vmatprep.subr.mxu0 0.0
        %1322 = vmatpush1.msra.mxu0 0.0
        %1323 = vmatprep.subr.mxu0 0.0
        %1324 = vmatpush1.msra.mxu0 0.0
        %1325 = vmatprep.subr.mxu0 0.0
        %1326 = vmatpush1.msra.mxu0 0.0
        %1327 = vmatprep.subr.mxu0 0.0
        %1328 = vmatpush1.msra.mxu0 0.0
        %1329 = vmatprep.subr.mxu0 0.0
        %1330 = vmatpush1.msra.mxu0 0.0
        %1331 = vmatprep.subr.mxu0 0.0
        %1332 = vmatpush1.msra.mxu0 0.0
        %1333 = vmatprep.subr.mxu0 0.0
        %1334 = vmatpush1.msra.mxu0 0.0
        %1335 = vmatprep.subr.mxu0 0.0
        %1336 = vmatpush1.msra.mxu0 0.0
        %1337 = vmatprep.subr.mxu0 0.0
        %1338 = vmatpush1.msra.mxu0 0.0
        %1339 = vmatprep.subr.mxu0 0.0
        %1340 = vmatpush1.msra.mxu0 0.0
        %1341 = vmatprep.subr.mxu0 0.0
        %1342 = vmatpush1.msra.mxu0 0.0
        %1343 = vmatprep.subr.mxu0 0.0
        %1344 = vmatpush1.msra.mxu0 0.0
        %1345 = vmatprep.subr.mxu0 0.0
        %1346 = vmatpush1.msra.mxu0 0.0
        %1347 = vmatprep.subr.mxu0 0.0
        %1348 = vmatpush1.msra.mxu0 0.0
        %1349 = vmatprep.subr.mxu0 0.0
        %1350 = vmatpush1.msra.mxu0 0.0
        %1351 = vmatprep.subr.mxu0 0.0
        %1352 = vmatpush1.msra.mxu0 0.0
        %1353 = vmatprep.mubr.f32.mxu0 0.0
        %1354 = vmatmul.mubr.f32.gmra.mrb[0].mxu0 %v1287
        %v1355 = vpop.f32.mrb[0].mxu0
        %v1356 = vadd.f32 0.0, %v1355
        %v1357 = vpop.f32.mrb[0].mxu0
        %v1358 = vadd.f32 0.0, %v1357
        %1359 = vdwg.mxu0
        %v1360 = vadd.f32 %v1284, %v1356
        %v1361 = vadd.f32 %v1285, %v1358
        %v1363 = vsel %vm263, %v1282, 0
        %1365 = vmatprep.subr.mxu0 %v252
        %1366 = vmatpush1.msra.mxu0 %v251
        %1367 = vmatprep.subr.mxu0 %v254
        %1368 = vmatpush1.msra.mxu0 %v253
        %1369 = vmatprep.subr.mxu0 %v256
        %1370 = vmatpush1.msra.mxu0 %v255
        %1371 = vmatprep.subr.mxu0 %v258
        %1372 = vmatpush1.msra.mxu0 %v257
        %1373 = vmatprep.subr.mxu0 0.0
        %1374 = vmatpush1.msra.mxu0 0.0
        %1375 = vmatprep.subr.mxu0 0.0
        %1376 = vmatpush1.msra.mxu0 0.0
        %1377 = vmatprep.subr.mxu0 0.0
        %1378 = vmatpush1.msra.mxu0 0.0
        %1379 = vmatprep.subr.mxu0 0.0
        %1380 = vmatpush1.msra.mxu0 0.0
        %1381 = vmatprep.subr.mxu0 0.0
        %1382 = vmatpush1.msra.mxu0 0.0
        %1383 = vmatprep.subr.mxu0 0.0
        %1384 = vmatpush1.msra.mxu0 0.0
        %1385 = vmatprep.subr.mxu0 0.0
        %1386 = vmatpush1.msra.mxu0 0.0
        %1387 = vmatprep.subr.mxu0 0.0
        %1388 = vmatpush1.msra.mxu0 0.0
        %1389 = vmatprep.subr.mxu0 0.0
        %1390 = vmatpush1.msra.mxu0 0.0
        %1391 = vmatprep.subr.mxu0 0.0
        %1392 = vmatpush1.msra.mxu0 0.0
        %1393 = vmatprep.subr.mxu0 0.0
        %1394 = vmatpush1.msra.mxu0 0.0
        %1395 = vmatprep.subr.mxu0 0.0
        %1396 = vmatpush1.msra.mxu0 0.0
        %1397 = vmatprep.subr.mxu0 0.0
        %1398 = vmatpush1.msra.mxu0 0.0
        %1399 = vmatprep.subr.mxu0 0.0
        %1400 = vmatpush1.msra.mxu0 0.0
        %1401 = vmatprep.subr.mxu0 0.0
        %1402 = vmatpush1.msra.mxu0 0.0
        %1403 = vmatprep.subr.mxu0 0.0
        %1404 = vmatpush1.msra.mxu0 0.0
        %1405 = vmatprep.subr.mxu0 0.0
        %1406 = vmatpush1.msra.mxu0 0.0
        %1407 = vmatprep.subr.mxu0 0.0
        %1408 = vmatpush1.msra.mxu0 0.0
        %1409 = vmatprep.subr.mxu0 0.0
        %1410 = vmatpush1.msra.mxu0 0.0
        %1411 = vmatprep.subr.mxu0 0.0
        %1412 = vmatpush1.msra.mxu0 0.0
        %1413 = vmatprep.subr.mxu0 0.0
        %1414 = vmatpush1.msra.mxu0 0.0
        %1415 = vmatprep.subr.mxu0 0.0
        %1416 = vmatpush1.msra.mxu0 0.0
        %1417 = vmatprep.subr.mxu0 0.0
        %1418 = vmatpush1.msra.mxu0 0.0
        %1419 = vmatprep.subr.mxu0 0.0
        %1420 = vmatpush1.msra.mxu0 0.0
        %1421 = vmatprep.subr.mxu0 0.0
        %1422 = vmatpush1.msra.mxu0 0.0
        %1423 = vmatprep.subr.mxu0 0.0
        %1424 = vmatpush1.msra.mxu0 0.0
        %1425 = vmatprep.subr.mxu0 0.0
        %1426 = vmatpush1.msra.mxu0 0.0
        %1427 = vmatprep.subr.mxu0 0.0
        %1428 = vmatpush1.msra.mxu0 0.0
        %1429 = vmatprep.mubr.f32.mxu0 0.0
        %1430 = vmatmul.mubr.f32.gmra.mrb[0].mxu0 %v1363
        %v1431 = vpop.f32.mrb[0].mxu0
        %v1432 = vadd.f32 0.0, %v1431
        %v1433 = vpop.f32.mrb[0].mxu0
        %v1434 = vadd.f32 0.0, %v1433
        %1435 = vdwg.mxu0
        %v1436 = vadd.f32 %v1360, %v1432
        %v1437 = vadd.f32 %v1361, %v1434
        %v1438 = vxor.u32 %v1436, 2147483648
        %v1439 = vmul.f32 %v1438, 1.442695
        %v1440 = vpow.pop %v1439
        %v1441 = vadd.f32 %v1440, 1.0
        %v1442 = vrcp.pop %v1441
        %v1443 = vmul.f32 1.0, %v1442
        %v1444 = vtanh.pop %v1437
        %v1445 = vsub.f32 1.0, %v1443
        %v1446 = vmul.f32 %v1445, %v1281
        %v1447 = vmul.f32 %v1443, %v1444
        %v1448 = vadd.f32 %v1446, %v1447
        %v1449 = vtanh.pop %v1448
        %1451 = vrot.lane.b32.xlu0 %v1443, 96
        %v1452 = vpop.permute.xlu0 %1451
        %v1454 = vmul.f32 %v1449, %v1452
        %1455 = vrot.lane.b32.xlu0 %v1282, 64
        %v1456 = vpop.permute.xlu0 %1455
        %v1458 = vmul.f32 %v1445, %v1456
        %1460 = vrot.lane.b32.xlu0 %v1444, 32
        %v1461 = vpop.permute.xlu0 %1460
        %v1463 = vmul.f32 %v1443, %v1461
        %v1464 = vadd.f32 %v1458, %v1463
        %v1465 = vtanh.pop %v1464
        %v1466 = vmul.f32 %v1465, %v1452
        %1468 = vrot.lane.b32.xlu0 %v1466, 96
        %v1469 = vpop.permute.xlu0 %1468
        %v1471 = vsel %vm263, %v1454, %v1469
        %s1472 = scalar_lea.vmem %s233, 40 [#allocation5]
        %1473 = vst.msk [vmem:[%s1472] sm:$0x3f] %vm450, %v1471
        %1474 = vst.msk [vmem:[#allocation2] sm:$0x3f] %vm452, %v1454
        %v1475 = vrot.slane %v1466, 5
        %v1477 = vrot.slane %v1466, 7
        %v1479 = vsel %vm458, %v1475, %v1477
        %1481 = vrot.lane.b32.xlu0 %v1479, 64
        %v1482 = vpop.permute.xlu0 %1481
        %1484 = vst.msk [vmem:[#allocation3] sm:$0x3f] %vm452, %v1482
        %v1485 = vld [vmem:[#allocation2] sm:$0x3f]
        %v1486 = vld [vmem:[#allocation3] sm:$0x3f]
        %s1487 = scalar_lea.vmem %s214, 96 [#allocation4]
        %v1488 = vld [vmem:[%s1487] sm:$0x3f]
        %v1489 = vld [vmem:[%s1487 + $0x8] sm:$0x3f]
        %v1491 = vsel %vm263, %v1485, 0
        %1493 = vmatprep.subr.mxu0 %v244
        %1494 = vmatpush1.msra.mxu0 %v243
        %1495 = vmatprep.subr.mxu0 %v246
        %1496 = vmatpush1.msra.mxu0 %v245
        %1497 = vmatprep.subr.mxu0 %v248
        %1498 = vmatpush1.msra.mxu0 %v247
        %1499 = vmatprep.subr.mxu0 %v250
        %1500 = vmatpush1.msra.mxu0 %v249
        %1501 = vmatprep.subr.mxu0 0.0
        %1502 = vmatpush1.msra.mxu0 0.0
        %1503 = vmatprep.subr.mxu0 0.0
        %1504 = vmatpush1.msra.mxu0 0.0
        %1505 = vmatprep.subr.mxu0 0.0
        %1506 = vmatpush1.msra.mxu0 0.0
        %1507 = vmatprep.subr.mxu0 0.0
        %1508 = vmatpush1.msra.mxu0 0.0
        %1509 = vmatprep.subr.mxu0 0.0
        %1510 = vmatpush1.msra.mxu0 0.0
        %1511 = vmatprep.subr.mxu0 0.0
        %1512 = vmatpush1.msra.mxu0 0.0
        %1513 = vmatprep.subr.mxu0 0.0
        %1514 = vmatpush1.msra.mxu0 0.0
        %1515 = vmatprep.subr.mxu0 0.0
        %1516 = vmatpush1.msra.mxu0 0.0
        %1517 = vmatprep.subr.mxu0 0.0
        %1518 = vmatpush1.msra.mxu0 0.0
        %1519 = vmatprep.subr.mxu0 0.0
        %1520 = vmatpush1.msra.mxu0 0.0
        %1521 = vmatprep.subr.mxu0 0.0
        %1522 = vmatpush1.msra.mxu0 0.0
        %1523 = vmatprep.subr.mxu0 0.0
        %1524 = vmatpush1.msra.mxu0 0.0
        %1525 = vmatprep.subr.mxu0 0.0
        %1526 = vmatpush1.msra.mxu0 0.0
        %1527 = vmatprep.subr.mxu0 0.0
        %1528 = vmatpush1.msra.mxu0 0.0
        %1529 = vmatprep.subr.mxu0 0.0
        %1530 = vmatpush1.msra.mxu0 0.0
        %1531 = vmatprep.subr.mxu0 0.0
        %1532 = vmatpush1.msra.mxu0 0.0
        %1533 = vmatprep.subr.mxu0 0.0
        %1534 = vmatpush1.msra.mxu0 0.0
        %1535 = vmatprep.subr.mxu0 0.0
        %1536 = vmatpush1.msra.mxu0 0.0
        %1537 = vmatprep.subr.mxu0 0.0
        %1538 = vmatpush1.msra.mxu0 0.0
        %1539 = vmatprep.subr.mxu0 0.0
        %1540 = vmatpush1.msra.mxu0 0.0
        %1541 = vmatprep.subr.mxu0 0.0
        %1542 = vmatpush1.msra.mxu0 0.0
        %1543 = vmatprep.subr.mxu0 0.0
        %1544 = vmatpush1.msra.mxu0 0.0
        %1545 = vmatprep.subr.mxu0 0.0
        %1546 = vmatpush1.msra.mxu0 0.0
        %1547 = vmatprep.subr.mxu0 0.0
        %1548 = vmatpush1.msra.mxu0 0.0
        %1549 = vmatprep.subr.mxu0 0.0
        %1550 = vmatpush1.msra.mxu0 0.0
        %1551 = vmatprep.subr.mxu0 0.0
        %1552 = vmatpush1.msra.mxu0 0.0
        %1553 = vmatprep.subr.mxu0 0.0
        %1554 = vmatpush1.msra.mxu0 0.0
        %1555 = vmatprep.subr.mxu0 0.0
        %1556 = vmatpush1.msra.mxu0 0.0
        %1557 = vmatprep.mubr.f32.mxu0 0.0
        %1558 = vmatmul.mubr.f32.gmra.mrb[0].mxu0 %v1491
        %v1559 = vpop.f32.mrb[0].mxu0
        %v1560 = vadd.f32 0.0, %v1559
        %v1561 = vpop.f32.mrb[0].mxu0
        %v1562 = vadd.f32 0.0, %v1561
        %1563 = vdwg.mxu0
        %v1564 = vadd.f32 %v1488, %v1560
        %v1565 = vadd.f32 %v1489, %v1562
        %v1567 = vsel %vm263, %v1486, 0
        %1569 = vmatprep.subr.mxu0 %v252
        %1570 = vmatpush1.msra.mxu0 %v251
        %1571 = vmatprep.subr.mxu0 %v254
        %1572 = vmatpush1.msra.mxu0 %v253
        %1573 = vmatprep.subr.mxu0 %v256
        %1574 = vmatpush1.msra.mxu0 %v255
        %1575 = vmatprep.subr.mxu0 %v258
        %1576 = vmatpush1.msra.mxu0 %v257
        %1577 = vmatprep.subr.mxu0 0.0
        %1578 = vmatpush1.msra.mxu0 0.0
        %1579 = vmatprep.subr.mxu0 0.0
        %1580 = vmatpush1.msra.mxu0 0.0
        %1581 = vmatprep.subr.mxu0 0.0
        %1582 = vmatpush1.msra.mxu0 0.0
        %1583 = vmatprep.subr.mxu0 0.0
        %1584 = vmatpush1.msra.mxu0 0.0
        %1585 = vmatprep.subr.mxu0 0.0
        %1586 = vmatpush1.msra.mxu0 0.0
        %1587 = vmatprep.subr.mxu0 0.0
        %1588 = vmatpush1.msra.mxu0 0.0
        %1589 = vmatprep.subr.mxu0 0.0
        %1590 = vmatpush1.msra.mxu0 0.0
        %1591 = vmatprep.subr.mxu0 0.0
        %1592 = vmatpush1.msra.mxu0 0.0
        %1593 = vmatprep.subr.mxu0 0.0
        %1594 = vmatpush1.msra.mxu0 0.0
        %1595 = vmatprep.subr.mxu0 0.0
        %1596 = vmatpush1.msra.mxu0 0.0
        %1597 = vmatprep.subr.mxu0 0.0
        %1598 = vmatpush1.msra.mxu0 0.0
        %1599 = vmatprep.subr.mxu0 0.0
        %1600 = vmatpush1.msra.mxu0 0.0
        %1601 = vmatprep.subr.mxu0 0.0
        %1602 = vmatpush1.msra.mxu0 0.0
        %1603 = vmatprep.subr.mxu0 0.0
        %1604 = vmatpush1.msra.mxu0 0.0
        %1605 = vmatprep.subr.mxu0 0.0
        %1606 = vmatpush1.msra.mxu0 0.0
        %1607 = vmatprep.subr.mxu0 0.0
        %1608 = vmatpush1.msra.mxu0 0.0
        %1609 = vmatprep.subr.mxu0 0.0
        %1610 = vmatpush1.msra.mxu0 0.0
        %1611 = vmatprep.subr.mxu0 0.0
        %1612 = vmatpush1.msra.mxu0 0.0
        %1613 = vmatprep.subr.mxu0 0.0
        %1614 = vmatpush1.msra.mxu0 0.0
        %1615 = vmatprep.subr.mxu0 0.0
        %1616 = vmatpush1.msra.mxu0 0.0
        %1617 = vmatprep.subr.mxu0 0.0
        %1618 = vmatpush1.msra.mxu0 0.0
        %1619 = vmatprep.subr.mxu0 0.0
        %1620 = vmatpush1.msra.mxu0 0.0
        %1621 = vmatprep.subr.mxu0 0.0
        %1622 = vmatpush1.msra.mxu0 0.0
        %1623 = vmatprep.subr.mxu0 0.0
        %1624 = vmatpush1.msra.mxu0 0.0
        %1625 = vmatprep.subr.mxu0 0.0
        %1626 = vmatpush1.msra.mxu0 0.0
        %1627 = vmatprep.subr.mxu0 0.0
        %1628 = vmatpush1.msra.mxu0 0.0
        %1629 = vmatprep.subr.mxu0 0.0
        %1630 = vmatpush1.msra.mxu0 0.0
        %1631 = vmatprep.subr.mxu0 0.0
        %1632 = vmatpush1.msra.mxu0 0.0
        %1633 = vmatprep.mubr.f32.mxu0 0.0
        %1634 = vmatmul.mubr.f32.gmra.mrb[0].mxu0 %v1567
        %v1635 = vpop.f32.mrb[0].mxu0
        %v1636 = vadd.f32 0.0, %v1635
        %v1637 = vpop.f32.mrb[0].mxu0
        %v1638 = vadd.f32 0.0, %v1637
        %1639 = vdwg.mxu0
        %v1640 = vadd.f32 %v1564, %v1636
        %v1641 = vadd.f32 %v1565, %v1638
        %v1642 = vxor.u32 %v1640, 2147483648
        %v1643 = vmul.f32 %v1642, 1.442695
        %v1644 = vpow.pop %v1643
        %v1645 = vadd.f32 %v1644, 1.0
        %v1646 = vrcp.pop %v1645
        %v1647 = vmul.f32 1.0, %v1646
        %v1648 = vtanh.pop %v1641
        %v1649 = vsub.f32 1.0, %v1647
        %v1650 = vmul.f32 %v1649, %v1485
        %v1651 = vmul.f32 %v1647, %v1648
        %v1652 = vadd.f32 %v1650, %v1651
        %v1653 = vtanh.pop %v1652
        %1655 = vrot.lane.b32.xlu0 %v1647, 96
        %v1656 = vpop.permute.xlu0 %1655
        %v1658 = vmul.f32 %v1653, %v1656
        %1659 = vrot.lane.b32.xlu0 %v1486, 64
        %v1660 = vpop.permute.xlu0 %1659
        %v1662 = vmul.f32 %v1649, %v1660
        %1664 = vrot.lane.b32.xlu0 %v1648, 32
        %v1665 = vpop.permute.xlu0 %1664
        %v1667 = vmul.f32 %v1647, %v1665
        %v1668 = vadd.f32 %v1662, %v1667
        %v1669 = vtanh.pop %v1668
        %v1670 = vmul.f32 %v1669, %v1656
        %1672 = vrot.lane.b32.xlu0 %v1670, 96
        %v1673 = vpop.permute.xlu0 %1672
        %v1675 = vsel %vm263, %v1658, %v1673
        %s1676 = scalar_lea.vmem %s233, 48 [#allocation5]
        %1677 = vst.msk [vmem:[%s1676] sm:$0x3f] %vm450, %v1675
        %1678 = vst.msk [vmem:[#allocation2] sm:$0x3f] %vm452, %v1658
        %v1679 = vrot.slane %v1670, 5
        %v1681 = vrot.slane %v1670, 7
        %v1683 = vsel %vm458, %v1679, %v1681
        %1685 = vrot.lane.b32.xlu0 %v1683, 64
        %v1686 = vpop.permute.xlu0 %1685
        %1688 = vst.msk [vmem:[#allocation3] sm:$0x3f] %vm452, %v1686
        %v1689 = vld [vmem:[#allocation2] sm:$0x3f]
        %v1690 = vld [vmem:[#allocation3] sm:$0x3f]
        %s1691 = scalar_lea.vmem %s214, 112 [#allocation4]
        %v1692 = vld [vmem:[%s1691] sm:$0x3f]
        %v1693 = vld [vmem:[%s1691 + $0x8] sm:$0x3f]
        %v1695 = vsel %vm263, %v1689, 0
        %1697 = vmatprep.subr.mxu0 %v244
        %1698 = vmatpush1.msra.mxu0 %v243
        %1699 = vmatprep.subr.mxu0 %v246
        %1700 = vmatpush1.msra.mxu0 %v245
        %1701 = vmatprep.subr.mxu0 %v248
        %1702 = vmatpush1.msra.mxu0 %v247
        %1703 = vmatprep.subr.mxu0 %v250
        %1704 = vmatpush1.msra.mxu0 %v249
        %1705 = vmatprep.subr.mxu0 0.0
        %1706 = vmatpush1.msra.mxu0 0.0
        %1707 = vmatprep.subr.mxu0 0.0
        %1708 = vmatpush1.msra.mxu0 0.0
        %1709 = vmatprep.subr.mxu0 0.0
        %1710 = vmatpush1.msra.mxu0 0.0
        %1711 = vmatprep.subr.mxu0 0.0
        %1712 = vmatpush1.msra.mxu0 0.0
        %1713 = vmatprep.subr.mxu0 0.0
        %1714 = vmatpush1.msra.mxu0 0.0
        %1715 = vmatprep.subr.mxu0 0.0
        %1716 = vmatpush1.msra.mxu0 0.0
        %1717 = vmatprep.subr.mxu0 0.0
        %1718 = vmatpush1.msra.mxu0 0.0
        %1719 = vmatprep.subr.mxu0 0.0
        %1720 = vmatpush1.msra.mxu0 0.0
        %1721 = vmatprep.subr.mxu0 0.0
        %1722 = vmatpush1.msra.mxu0 0.0
        %1723 = vmatprep.subr.mxu0 0.0
        %1724 = vmatpush1.msra.mxu0 0.0
        %1725 = vmatprep.subr.mxu0 0.0
        %1726 = vmatpush1.msra.mxu0 0.0
        %1727 = vmatprep.subr.mxu0 0.0
        %1728 = vmatpush1.msra.mxu0 0.0
        %1729 = vmatprep.subr.mxu0 0.0
        %1730 = vmatpush1.msra.mxu0 0.0
        %1731 = vmatprep.subr.mxu0 0.0
        %1732 = vmatpush1.msra.mxu0 0.0
        %1733 = vmatprep.subr.mxu0 0.0
        %1734 = vmatpush1.msra.mxu0 0.0
        %1735 = vmatprep.subr.mxu0 0.0
        %1736 = vmatpush1.msra.mxu0 0.0
        %1737 = vmatprep.subr.mxu0 0.0
        %1738 = vmatpush1.msra.mxu0 0.0
        %1739 = vmatprep.subr.mxu0 0.0
        %1740 = vmatpush1.msra.mxu0 0.0
        %1741 = vmatprep.subr.mxu0 0.0
        %1742 = vmatpush1.msra.mxu0 0.0
        %1743 = vmatprep.subr.mxu0 0.0
        %1744 = vmatpush1.msra.mxu0 0.0
        %1745 = vmatprep.subr.mxu0 0.0
        %1746 = vmatpush1.msra.mxu0 0.0
        %1747 = vmatprep.subr.mxu0 0.0
        %1748 = vmatpush1.msra.mxu0 0.0
        %1749 = vmatprep.subr.mxu0 0.0
        %1750 = vmatpush1.msra.mxu0 0.0
        %1751 = vmatprep.subr.mxu0 0.0
        %1752 = vmatpush1.msra.mxu0 0.0
        %1753 = vmatprep.subr.mxu0 0.0
        %1754 = vmatpush1.msra.mxu0 0.0
        %1755 = vmatprep.subr.mxu0 0.0
        %1756 = vmatpush1.msra.mxu0 0.0
        %1757 = vmatprep.subr.mxu0 0.0
        %1758 = vmatpush1.msra.mxu0 0.0
        %1759 = vmatprep.subr.mxu0 0.0
        %1760 = vmatpush1.msra.mxu0 0.0
        %1761 = vmatprep.mubr.f32.mxu0 0.0
        %1762 = vmatmul.mubr.f32.gmra.mrb[0].mxu0 %v1695
        %v1763 = vpop.f32.mrb[0].mxu0
        %v1764 = vadd.f32 0.0, %v1763
        %v1765 = vpop.f32.mrb[0].mxu0
        %v1766 = vadd.f32 0.0, %v1765
        %1767 = vdwg.mxu0
        %v1768 = vadd.f32 %v1692, %v1764
        %v1769 = vadd.f32 %v1693, %v1766
        %v1771 = vsel %vm263, %v1690, 0
        %1773 = vmatprep.subr.mxu0 %v252
        %1774 = vmatpush1.msra.mxu0 %v251
        %1775 = vmatprep.subr.mxu0 %v254
        %1776 = vmatpush1.msra.mxu0 %v253
        %1777 = vmatprep.subr.mxu0 %v256
        %1778 = vmatpush1.msra.mxu0 %v255
        %1779 = vmatprep.subr.mxu0 %v258
        %1780 = vmatpush1.msra.mxu0 %v257
        %1781 = vmatprep.subr.mxu0 0.0
        %1782 = vmatpush1.msra.mxu0 0.0
        %1783 = vmatprep.subr.mxu0 0.0
        %1784 = vmatpush1.msra.mxu0 0.0
        %1785 = vmatprep.subr.mxu0 0.0
        %1786 = vmatpush1.msra.mxu0 0.0
        %1787 = vmatprep.subr.mxu0 0.0
        %1788 = vmatpush1.msra.mxu0 0.0
        %1789 = vmatprep.subr.mxu0 0.0
        %1790 = vmatpush1.msra.mxu0 0.0
        %1791 = vmatprep.subr.mxu0 0.0
        %1792 = vmatpush1.msra.mxu0 0.0
        %1793 = vmatprep.subr.mxu0 0.0
        %1794 = vmatpush1.msra.mxu0 0.0
        %1795 = vmatprep.subr.mxu0 0.0
        %1796 = vmatpush1.msra.mxu0 0.0
        %1797 = vmatprep.subr.mxu0 0.0
        %1798 = vmatpush1.msra.mxu0 0.0
        %1799 = vmatprep.subr.mxu0 0.0
        %1800 = vmatpush1.msra.mxu0 0.0
        %1801 = vmatprep.subr.mxu0 0.0
        %1802 = vmatpush1.msra.mxu0 0.0
        %1803 = vmatprep.subr.mxu0 0.0
        %1804 = vmatpush1.msra.mxu0 0.0
        %1805 = vmatprep.subr.mxu0 0.0
        %1806 = vmatpush1.msra.mxu0 0.0
        %1807 = vmatprep.subr.mxu0 0.0
        %1808 = vmatpush1.msra.mxu0 0.0
        %1809 = vmatprep.subr.mxu0 0.0
        %1810 = vmatpush1.msra.mxu0 0.0
        %1811 = vmatprep.subr.mxu0 0.0
        %1812 = vmatpush1.msra.mxu0 0.0
        %1813 = vmatprep.subr.mxu0 0.0
        %1814 = vmatpush1.msra.mxu0 0.0
        %1815 = vmatprep.subr.mxu0 0.0
        %1816 = vmatpush1.msra.mxu0 0.0
        %1817 = vmatprep.subr.mxu0 0.0
        %1818 = vmatpush1.msra.mxu0 0.0
        %1819 = vmatprep.subr.mxu0 0.0
        %1820 = vmatpush1.msra.mxu0 0.0
        %1821 = vmatprep.subr.mxu0 0.0
        %1822 = vmatpush1.msra.mxu0 0.0
        %1823 = vmatprep.subr.mxu0 0.0
        %1824 = vmatpush1.msra.mxu0 0.0
        %1825 = vmatprep.subr.mxu0 0.0
        %1826 = vmatpush1.msra.mxu0 0.0
        %1827 = vmatprep.subr.mxu0 0.0
        %1828 = vmatpush1.msra.mxu0 0.0
        %1829 = vmatprep.subr.mxu0 0.0
        %1830 = vmatpush1.msra.mxu0 0.0
        %1831 = vmatprep.subr.mxu0 0.0
        %1832 = vmatpush1.msra.mxu0 0.0
        %1833 = vmatprep.subr.mxu0 0.0
        %1834 = vmatpush1.msra.mxu0 0.0
        %1835 = vmatprep.subr.mxu0 0.0
        %1836 = vmatpush1.msra.mxu0 0.0
        %1837 = vmatprep.mubr.f32.mxu0 0.0
        %1838 = vmatmul.mubr.f32.gmra.mrb[0].mxu0 %v1771
        %v1839 = vpop.f32.mrb[0].mxu0
        %v1840 = vadd.f32 0.0, %v1839
        %v1841 = vpop.f32.mrb[0].mxu0
        %v1842 = vadd.f32 0.0, %v1841
        %1843 = vdwg.mxu0
        %v1844 = vadd.f32 %v1768, %v1840
        %v1845 = vadd.f32 %v1769, %v1842
        %v1846 = vxor.u32 %v1844, 2147483648
        %v1847 = vmul.f32 %v1846, 1.442695
        %v1848 = vpow.pop %v1847
        %v1849 = vadd.f32 %v1848, 1.0
        %v1850 = vrcp.pop %v1849
        %v1851 = vmul.f32 1.0, %v1850
        %v1852 = vtanh.pop %v1845
        %v1853 = vsub.f32 1.0, %v1851
        %v1854 = vmul.f32 %v1853, %v1689
        %v1855 = vmul.f32 %v1851, %v1852
        %v1856 = vadd.f32 %v1854, %v1855
        %v1857 = vtanh.pop %v1856
        %1859 = vrot.lane.b32.xlu0 %v1851, 96
        %v1860 = vpop.permute.xlu0 %1859
        %v1862 = vmul.f32 %v1857, %v1860
        %1863 = vrot.lane.b32.xlu0 %v1690, 64
        %v1864 = vpop.permute.xlu0 %1863
        %v1866 = vmul.f32 %v1853, %v1864
        %1868 = vrot.lane.b32.xlu0 %v1852, 32
        %v1869 = vpop.permute.xlu0 %1868
        %v1871 = vmul.f32 %v1851, %v1869
        %v1872 = vadd.f32 %v1866, %v1871
        %v1873 = vtanh.pop %v1872
        %v1874 = vmul.f32 %v1873, %v1860
        %1876 = vrot.lane.b32.xlu0 %v1874, 96
        %v1877 = vpop.permute.xlu0 %1876
        %v1879 = vsel %vm263, %v1862, %v1877
        %s1880 = scalar_lea.vmem %s233, 56 [#allocation5]
        %1881 = vst.msk [vmem:[%s1880] sm:$0x3f] %vm450, %v1879
        %1882 = vst.msk [vmem:[#allocation2] sm:$0x3f] %vm452, %v1862
        %v1883 = vrot.slane %v1874, 5
        %v1885 = vrot.slane %v1874, 7
        %v1887 = vsel %vm458, %v1883, %v1885
        %1889 = vrot.lane.b32.xlu0 %v1887, 64
        %v1890 = vpop.permute.xlu0 %1889
        %1892 = vst.msk [vmem:[#allocation3] sm:$0x3f] %vm452, %v1890
        %s1893 = sand.u32 %s106, 1
        %s1894 = sand.u32 %s106, 1
        %s1895 = smul.addr %s1894, 64
        %s1896 = scalar_lea.vmem [#allocation5], %s1895
        // Predicated region
        $region60: #{tpu_custom_call.1} parent=50 // pred_check
          %p1897 = pneg %p116
        $region61: #{tpu_custom_call.1} parent=50 // pred_check_branch
          %1899 = sbr.rel (%p1897) target = $region63
        $region62: #{tpu_custom_call.1} parent=50 // pred_region
          %s1900 = smul.u32 8, %s19
          %s1901 = smul.addr %s1900, 2
          %s1902 = sadd.s32 %s18, %s1901
          %s1903 = smul.addr %s1902, 8
          %s1904 = scalar_lea.vmem %s3, %s1903
          // Predicated region
          $region64: #{tpu_custom_call.1} parent=62 // pred_check
            _
          $region65: #{tpu_custom_call.1} parent=62 // pred_check_branch
            %1906 = sbr.rel (0) target = $region67
          $region66: #{tpu_custom_call.1} parent=62 // pred_region
            // Predicated region
            $region68: #{tpu_custom_call.1} parent=66 // pred_check
              _
            $region69: #{tpu_custom_call.1} parent=66 // pred_check_branch
              %1908 = sbr.rel (0) target = $region71
            $region70: #{tpu_custom_call.1} parent=66 // pred_region
              // Predicated region
              $region83: #{tpu_custom_call.1} parent=70 // pred_check
                _
              $region84: #{tpu_custom_call.1} parent=70 // pred_check_branch
                %1937 = sbr.rel (0) target = $region86
              $region85: #{tpu_custom_call.1} parent=70 // pred_region
                loop: start=0, step=1, limit=1
                $region87: #{tpu_custom_call.1} parent=85 // loop_pre_header
                  _
                $region88: #{tpu_custom_call.1} parent=85 // loop_header
                  %s1939 = sphi 0, %s1943
                  %p1940 = scmp.ge.s32.totalorder %s1939, 1
                  %s1944 = sphi %s1896, %s1896
                  %s1945 = sphi %s1904, %s1904
                $region89: #{tpu_custom_call.1} parent=85 // loop_header_branch
                  %1942 = sbr.rel (%p1940) target = $region93
                $region90: #{tpu_custom_call.1} parent=85 // loop_body
                  %v1946 = vld [vmem:[%s1944] sm:$0xff]
                  %1947 = vst [vmem:[%s1945] sm:$0xff] %v1946
                  %v1948 = vld [vmem:[%s1944 + $0x8] sm:$0xff]
                  %1949 = vst [vmem:[%s1945 + $0x10] sm:$0xff] %v1948
                  %v1950 = vld [vmem:[%s1944 + $0x10] sm:$0xff]
                  %1951 = vst [vmem:[%s1945 + $0x20] sm:$0xff] %v1950
                  %v1952 = vld [vmem:[%s1944 + $0x18] sm:$0xff]
                  %1953 = vst [vmem:[%s1945 + $0x30] sm:$0xff] %v1952
                  %v1954 = vld [vmem:[%s1944 + $0x20] sm:$0xff]
                  %1955 = vst [vmem:[%s1945 + $0x40] sm:$0xff] %v1954
                  %v1956 = vld [vmem:[%s1944 + $0x28] sm:$0xff]
                  %1957 = vst [vmem:[%s1945 + $0x50] sm:$0xff] %v1956
                  %v1958 = vld [vmem:[%s1944 + $0x30] sm:$0xff]
                  %1959 = vst [vmem:[%s1945 + $0x60] sm:$0xff] %v1958
                  %v1960 = vld [vmem:[%s1944 + $0x38] sm:$0xff]
                  %1961 = vst [vmem:[%s1945 + $0x70] sm:$0xff] %v1960
                $region91: #{tpu_custom_call.1} parent=85 // loop_footer
                  %s1943 = sadd.s32 1, %s1939
                $region92: #{tpu_custom_call.1} parent=85 // loop_footer_branch
                  %1938 = sbr.rel target = $region88
                $region93: #{tpu_custom_call.1} parent=85 // loop_exit
                  _
              $region86: #{tpu_custom_call.1} parent=70 // pred_fallthru
                _
              // Predicated region
              $region94: #{tpu_custom_call.1} parent=70 // pred_check
                _
              $region95: #{tpu_custom_call.1} parent=70 // pred_check_branch
                %1963 = sbr.rel target = $region97
              $region96: #{tpu_custom_call.1} parent=70 // pred_region
                _
              $region97: #{tpu_custom_call.1} parent=70 // pred_fallthru
                _
            $region71: #{tpu_custom_call.1} parent=66 // pred_fallthru
              _
            // Predicated region
            $region72: #{tpu_custom_call.1} parent=66 // pred_check
              _
            $region73: #{tpu_custom_call.1} parent=66 // pred_check_branch
              %1910 = sbr.rel target = $region75
            $region74: #{tpu_custom_call.1} parent=66 // pred_region
              loop: start=0, step=1, limit=1
              $region76: #{tpu_custom_call.1} parent=74 // loop_pre_header
                _
              $region77: #{tpu_custom_call.1} parent=74 // loop_header
                %s1913 = sphi 0, %s1917
                %p1914 = scmp.ge.s32.totalorder %s1913, 1
                %s1918 = sphi %s1896, %s1896
                %s1919 = sphi %s1904, %s1904
              $region78: #{tpu_custom_call.1} parent=74 // loop_header_branch
                %1916 = sbr.rel (%p1914) target = $region82
              $region79: #{tpu_custom_call.1} parent=74 // loop_body
                %v1920 = vld [vmem:[%s1918] sm:$0xff]
                %1921 = vst [vmem:[%s1919] sm:$0xff] %v1920
                %v1922 = vld [vmem:[%s1918 + $0x8] sm:$0xff]
                %1923 = vst [vmem:[%s1919 + $0x10] sm:$0xff] %v1922
                %v1924 = vld [vmem:[%s1918 + $0x10] sm:$0xff]
                %1925 = vst [vmem:[%s1919 + $0x20] sm:$0xff] %v1924
                %v1926 = vld [vmem:[%s1918 + $0x18] sm:$0xff]
                %1927 = vst [vmem:[%s1919 + $0x30] sm:$0xff] %v1926
                %v1928 = vld [vmem:[%s1918 + $0x20] sm:$0xff]
                %1929 = vst [vmem:[%s1919 + $0x40] sm:$0xff] %v1928
                %v1930 = vld [vmem:[%s1918 + $0x28] sm:$0xff]
                %1931 = vst [vmem:[%s1919 + $0x50] sm:$0xff] %v1930
                %v1932 = vld [vmem:[%s1918 + $0x30] sm:$0xff]
                %1933 = vst [vmem:[%s1919 + $0x60] sm:$0xff] %v1932
                %v1934 = vld [vmem:[%s1918 + $0x38] sm:$0xff]
                %1935 = vst [vmem:[%s1919 + $0x70] sm:$0xff] %v1934
              $region80: #{tpu_custom_call.1} parent=74 // loop_footer
                %s1917 = sadd.s32 1, %s1913
              $region81: #{tpu_custom_call.1} parent=74 // loop_footer_branch
                %1912 = sbr.rel target = $region77
              $region82: #{tpu_custom_call.1} parent=74 // loop_exit
                _
            $region75: #{tpu_custom_call.1} parent=66 // pred_fallthru
              _
          $region67: #{tpu_custom_call.1} parent=62 // pred_fallthru
            _
          %1964 = vnop
        $region63: #{tpu_custom_call.1} parent=50 // pred_fallthru
          _
      $region51: #{tpu_custom_call.1} parent=5 // pred_fallthru
        _
      %p1965 = scmp.le.s32.totalorder 2, %s9
      // Predicated region
      $region98: #{tpu_custom_call.1} parent=5 // pred_check
        %p1966 = pneg %p1965
      $region99: #{tpu_custom_call.1} parent=5 // pred_check_branch
        %1968 = sbr.rel (%p1966) target = $region101
      $region100: #{tpu_custom_call.1} parent=5 // pred_region
        %s1969 = ssub.s32 %s9, 2
        // Predicated region
        $region102: #{tpu_custom_call.1} parent=100 // pred_check
          %p1970 = pneg %p122
        $region103: #{tpu_custom_call.1} parent=100 // pred_check_branch
          %1972 = sbr.rel (%p1970) target = $region105
        $region104: #{tpu_custom_call.1} parent=100 // pred_region
          %s1973 = sand.u32 %s107, 1
          %s1974 = sand.u32 %s107, 1
          %s1975 = smul.addr %s1974, 64
          %s1976 = scalar_lea.vmem [#allocation5], %s1975
        $region105: #{tpu_custom_call.1} parent=100 // pred_fallthru
          _
      $region101: #{tpu_custom_call.1} parent=5 // pred_fallthru
        _
    $region6: #{tpu_custom_call.1} parent=1 // loop_footer
      %s13 = sadd.s32 1, %s9
    $region7: #{tpu_custom_call.1} parent=1 // loop_footer_branch
      %8 = sbr.rel target = $region3
    $region8: #{tpu_custom_call.1} parent=1 // loop_exit
      _

</llo_original>
